<compile_context>
chip_gen: v5e
topology: v5e:2x2
jax: 0.10.0
libtpu: 0.0.40
codegen_flags: <defaults>
</compile_context>

<pallas_src>
import functools

import numpy as np

import jax
import jax.numpy as jnp
from jax.experimental import pallas as pl
from jax.experimental.pallas import tpu as pltpu

BN_EPS = 1e-5
LEAKY_SLOPE = 0.01  # nn.LeakyReLU() default


# --------------------------------------------------------------------------- helpers
def _round_up(x, m):
    return ((x + m - 1) // m) * m


@functools.lru_cache(maxsize=None)
def _vmem_budget():
    """(vmem_limit_bytes, streaming budget in bytes) — generation aware.

    128 MiB-VMEM parts (v5e/v6e): raise the scoped limit and grow spatial tiles.
    64 MiB parts (v7x-class): keep the conservative 32 MiB scoped limit.
    """
    cap = 64 * 1024 * 1024
    try:
        cap = int(getattr(pltpu.get_tpu_info(), "vmem_capacity_bytes", cap))
    except Exception:
        pass
    if cap >= 128 * 1024 * 1024:
        return 64 * 1024 * 1024, 32 * 1024 * 1024
    return 32 * 1024 * 1024, 14 * 1024 * 1024


def _pick_m_tile(m_sp, bytes_per_col, budget, fixed=0):
    """Largest 128-multiple lane tile whose double-buffered streams fit `budget`."""
    avail = max(budget - fixed, 1 << 20)
    cap = max(128, (avail // max(bytes_per_col, 1)) // 128 * 128)
    return int(min(4096, _round_up(m_sp, 128), cap))


def _extract_patches(x, kh, kw, stride, padding, dilation):
    """NCHW -> (N, Cin*KH*KW, OH*OW) im2col.  Fallback path only (strided / huge)."""
    n, c, h, w = x.shape
    oh = (h + 2 * padding - dilation * (kh - 1) - 1) // stride + 1
    ow = (w + 2 * padding - dilation * (kw - 1) - 1) // stride + 1
    xp = jnp.pad(x, ((0, 0), (0, 0), (padding, padding), (padding, padding)))
    slices = []
    for i in range(kh):
        for j in range(kw):
            r0, c0 = i * dilation, j * dilation
            slices.append(xp[:, :,
                             r0:r0 + (oh - 1) * stride + 1:stride,
                             c0:c0 + (ow - 1) * stride + 1:stride])
    p = jnp.stack(slices, axis=2)                         # (N, Cin, KH*KW, OH, OW)
    return p.reshape(n, c * kh * kw, oh * ow), oh, ow


# --------------------------------------------------------------------------- kernels
def _gemm_stats_kernel(p_ref, w_ref, b_ref, y_ref, stats_ref, s_acc, ss_acc):
    """Lane-dense conv GEMM tile + single-pass BN sums accumulated in VMEM scratch.

    p_ref: (1, K, Mt) bf16   w_ref: (Cout_p, K) bf16   b_ref: (Cout_p, 1) f32
    y_ref: (1, Cout_p, Mt) bf16
    stats_ref: (1, Cout_p, 2) f32 — written once per batch image (last m step).
    """
    m = pl.program_id(1)
    y = jnp.dot(w_ref[...], p_ref[0], preferred_element_type=jnp.float32)   # MXU, f32
    y = y + b_ref[...]
    y_ref[0] = y.astype(y_ref.dtype)

    @pl.when(m == 0)
    def _():
        s_acc[...] = jnp.zeros_like(s_acc)
        ss_acc[...] = jnp.zeros_like(ss_acc)

    s_acc[...] += jnp.sum(y, axis=1, keepdims=True)
    ss_acc[...] += jnp.sum(y * y, axis=1, keepdims=True)

    @pl.when(m == pl.num_programs(1) - 1)
    def _():
        stats_ref[0, :, 0:1] = s_acc[...]
        stats_ref[0, :, 1:2] = ss_acc[...]


def _convkxk_direct_kernel(x_ref, w_ref, b_ref, mask_ref, y_ref, stats_ref, acc_ref,
                           *, kh, kw, dil, wp, m_cols):
    """Stride-1 KxK conv as KH*KW shifted matmuls — no im2col materialised in HBM.

    One grid cell = one batch image.  The padded image is flattened (Hp*Wp), so
    tap (i, j) is just an offset slice at i*d*Wp + j*d of length M.

    x_ref:    (1, Cin_p, Xlen) bf16  flattened zero-padded NCHW image
    w_ref:    (KH*KW, Cout_p, Cin_p) bf16
    b_ref:    (Cout_p, 1) f32
    mask_ref: (1, M) f32 — 1.0 on valid output columns (row width Wp, valid OW)
    y_ref:    (1, Cout_p, M) bf16    stats_ref: (1, Cout_p, 2) f32
    acc_ref:  VMEM (Cout_p, M) f32 scratch accumulator
    """
    for i in range(kh):
        for j in range(kw):
            idx = i * kw + j
            off = (i * dil) * wp + j * dil                       # static offset
            xs = x_ref[0, :, pl.ds(off, m_cols)]                 # (Cin_p, M) bf16
            contrib = jnp.dot(w_ref[idx], xs, preferred_element_type=jnp.float32)
            if idx == 0:
                acc_ref[...] = contrib + b_ref[...]
            else:
                acc_ref[...] += contrib
    y = acc_ref[...] * mask_ref[...]                             # zero invalid cols
    y_ref[0] = y.astype(y_ref.dtype)
    stats_ref[0, :, 0:1] = jnp.sum(y, axis=1, keepdims=True)
    stats_ref[0, :, 1:2] = jnp.sum(y * y, axis=1, keepdims=True)


def _bn_affine_kernel(y_ref, scale_ref, shift_ref, o_ref, *, act_slope):
    """out = y * scale + shift (folded BN), optional fused LeakyReLU.  f32 math."""
    y = y_ref[0].astype(jnp.float32)
    out = y * scale_ref[...] + shift_ref[...]
    if act_slope is not None:
        out = jnp.where(out >= 0.0, out, out * act_slope)
    o_ref[0] = out.astype(o_ref.dtype)


# --------------------------------------------------------------------------- conv wrappers
def _gemm_tiled_pallas(p_bf16, w_bf16, b_f32):
    """p (N,K,M) bf16 x w (Cout_p,K) bf16 -> y (N,Cout_p,M_pad) bf16 + BN sums."""
    vmem_limit, budget = _vmem_budget()
    n, k, m_sp = p_bf16.shape
    cout_pad = w_bf16.shape[0]

    bytes_per_col = 2 * (k * 2 + cout_pad * 2)            # double-buffered bf16 in+out
    fixed = 2 * cout_pad * k * 2 + (1 << 16)              # weight double-buffer, misc
    m_tile = _pick_m_tile(m_sp, bytes_per_col, budget, fixed)
    m_pad = _round_up(m_sp, m_tile)
    if m_pad != m_sp:
        # Padded columns are all-zero patches -> y == 0 (zero bias for BN convs),
        # so the single-pass BN sums stay exact.
        p_bf16 = jnp.pad(p_bf16, ((0, 0), (0, 0), (0, m_pad - m_sp)))
    n_m = m_pad // m_tile

    flops = 2 * n * m_pad * k * cout_pad
    bytes_accessed = (2 * (n * k * m_pad + cout_pad * k + n * cout_pad * m_pad)
                      + 4 * (cout_pad + n * cout_pad * 2))

    y, stats = pl.pallas_call(
        _gemm_stats_kernel,
        out_shape=(jax.ShapeDtypeStruct((n, cout_pad, m_pad), jnp.bfloat16),
                   jax.ShapeDtypeStruct((n, cout_pad, 2), jnp.float32)),
        grid_spec=pltpu.PrefetchScalarGridSpec(
            num_scalar_prefetch=0,
            grid=(n, n_m),
            in_specs=[
                pl.BlockSpec((1, k, m_tile), lambda b, m: (b, 0, m)),
                pl.BlockSpec((cout_pad, k), lambda b, m: (0, 0)),
                pl.BlockSpec((cout_pad, 1), lambda b, m: (0, 0)),
            ],
            out_specs=[
                pl.BlockSpec((1, cout_pad, m_tile), lambda b, m: (b, 0, m)),
                pl.BlockSpec((1, cout_pad, 2), lambda b, m: (b, 0, 0)),
            ],
            scratch_shapes=[pltpu.VMEM((cout_pad, 1), jnp.float32),
                            pltpu.VMEM((cout_pad, 1), jnp.float32)]),
        compiler_params=pltpu.CompilerParams(
            dimension_semantics=("parallel", "arbitrary"),
            vmem_limit_bytes=vmem_limit),
        cost_estimate=pl.CostEstimate(flops=int(flops), transcendentals=0,
                                      bytes_accessed=int(bytes_accessed)),
    )(p_bf16, w_bf16, b_f32)
    return y, stats, m_tile


def _conv2d_gemm_pallas(x, weight, bias, *, stride, padding, dilation):
    """Conv2d via Pallas.  Returns (y_padded (N,Cout_p,M_pad) bf16,
    stats (N,Cout_p,2) f32 of per-channel (sum, sum_sq) over valid positions, info)."""
    n, cin, h, w = x.shape
    cout, _, kh, kw = weight.shape
    cout_pad = _round_up(cout, 8)
    vmem_limit, budget = _vmem_budget()

    oh = (h + 2 * padding - dilation * (kh - 1) - 1) // stride + 1
    ow = (w + 2 * padding - dilation * (kw - 1) - 1) // stride + 1

    x_bf = x.astype(jnp.bfloat16)
    b2 = jnp.zeros((cout_pad, 1), jnp.float32)
    if bias is not None:
        b2 = b2.at[:cout, 0].set(bias.astype(jnp.float32))

    # ---------- 1x1 / stride-1: zero-copy reshape, tiled lane-dense GEMM ----------
    if kh == 1 and kw == 1 and stride == 1 and padding == 0:
        k_pad = _round_up(cin, 8)
        p = x_bf.reshape(n, cin, h * w)
        if k_pad != cin:
            p = jnp.pad(p, ((0, 0), (0, k_pad - cin), (0, 0)))
        w2 = jnp.pad(weight.reshape(cout, cin),
                     ((0, cout_pad - cout), (0, k_pad - cin))).astype(jnp.bfloat16)
        y, stats, m_tile = _gemm_tiled_pallas(p, w2, b2)
        return y, stats, dict(kind="flat", oh=oh, ow=ow, m_tile=m_tile)

    # ---------- KxK / stride-1: direct shifted-matmul path (no im2col) ----------
    if stride == 1:
        cin_pad = _round_up(cin, 8)
        hp, wp = h + 2 * padding, w + 2 * padding
        l_valid = (oh - 1) * wp + ow                      # last valid flattened col + 1
        m_tile = _pick_m_tile(l_valid, 8 * cout_pad, budget)   # affine-pass streaming
        m_pad = _round_up(l_valid, m_tile)
        xlen = (kh - 1) * dilation * wp + (kw - 1) * dilation + m_pad

        est = (2 * cin_pad * xlen * 2 + 2 * kh * kw * cout_pad * cin_pad * 2
               + 2 * cout_pad * m_pad * 2 + cout_pad * m_pad * 4
               + 2 * m_pad * 4 + (1 << 17))
        if est <= (3 * vmem_limit) // 4:
            xq = x_bf
            if cin_pad != cin:
                xq = jnp.pad(xq, ((0, 0), (0, cin_pad - cin), (0, 0), (0, 0)))
            xp = jnp.pad(xq, ((0, 0), (0, 0), (padding, padding), (padding, padding)))
            xf = xp.reshape(n, cin_pad, hp * wp)          # zero-copy flatten
            if xlen > hp * wp:
                xf = jnp.pad(xf, ((0, 0), (0, 0), (0, xlen - hp * wp)))
            wk = jnp.transpose(weight, (2, 3, 0, 1)).reshape(kh * kw, cout, cin)
            wk = jnp.pad(wk, ((0, 0), (0, cout_pad - cout),
                              (0, cin_pad - cin))).astype(jnp.bfloat16)
            cols = np.arange(m_pad)
            mask = ((cols < l_valid) & ((cols % wp) < ow)).astype(np.float32)
            mask = jnp.asarray(mask.reshape(1, m_pad))

            flops = 2 * n * kh * kw * cout_pad * cin_pad * m_pad
            bytes_accessed = (2 * (n * cin_pad * xlen + kh * kw * cout_pad * cin_pad
                                   + n * cout_pad * m_pad)
                              + 4 * (m_pad + n * cout_pad * 2))

            kernel = functools.partial(_convkxk_direct_kernel, kh=kh, kw=kw,
                                       dil=dilation, wp=wp, m_cols=m_pad)
            y, stats = pl.pallas_call(
                kernel,
                out_shape=(jax.ShapeDtypeStruct((n, cout_pad, m_pad), jnp.bfloat16),
                           jax.ShapeDtypeStruct((n, cout_pad, 2), jnp.float32)),
                grid_spec=pltpu.PrefetchScalarGridSpec(
                    num_scalar_prefetch=0,
                    grid=(n,),
                    in_specs=[
                        pl.BlockSpec((1, cin_pad, xlen), lambda b: (b, 0, 0)),
                        pl.BlockSpec((kh * kw, cout_pad, cin_pad), lambda b: (0, 0, 0)),
                        pl.BlockSpec((cout_pad, 1), lambda b: (0, 0)),
                        pl.BlockSpec((1, m_pad), lambda b: (0, 0)),
                    ],
                    out_specs=[
                        pl.BlockSpec((1, cout_pad, m_pad), lambda b: (b, 0, 0)),
                        pl.BlockSpec((1, cout_pad, 2), lambda b: (b, 0, 0)),
                    ],
                    scratch_shapes=[pltpu.VMEM((cout_pad, m_pad), jnp.float32)]),
                compiler_params=pltpu.CompilerParams(
                    dimension_semantics=("parallel",),
                    vmem_limit_bytes=vmem_limit),
                cost_estimate=pl.CostEstimate(flops=int(flops), transcendentals=0,
                                              bytes_accessed=int(bytes_accessed)),
            )(xf, wk, b2, mask)
            return y, stats, dict(kind="rows", oh=oh, ow=ow, wp=wp, m_tile=m_tile)

    # ---------- fallback: host im2col + tiled GEMM (strided / oversized) ----------
    p, oh, ow = _extract_patches(x_bf, kh, kw, stride, padding, dilation)
    k = p.shape[1]
    k_pad = _round_up(k, 8)
    if k_pad != k:
        p = jnp.pad(p, ((0, 0), (0, k_pad - k), (0, 0)))
    w2 = jnp.pad(weight.reshape(cout, k),
                 ((0, cout_pad - cout), (0, k_pad - k))).astype(jnp.bfloat16)
    y, stats, m_tile = _gemm_tiled_pallas(p, w2, b2)
    return y, stats, dict(kind="flat", oh=oh, ow=ow, m_tile=m_tile)


def _to_nchw(y, cout, info):
    """Extract the valid NCHW output from the padded lane-dense (N, Cout_p, M) slab."""
    n = y.shape[0]
    oh, ow = info["oh"], info["ow"]
    if info["kind"] == "flat":
        return y[:, :cout, :oh * ow].reshape(n, cout, oh, ow)
    wp = info["wp"]
    need = oh * wp
    yv = y[:, :cout, :]
    if yv.shape[-1] < need:
        yv = jnp.pad(yv, ((0, 0), (0, 0), (0, need - yv.shape[-1])))
    else:
        yv = yv[:, :, :need]
    return yv.reshape(n, cout, oh, wp)[:, :, :, :ow]


def _bn_affine_pallas(y, scale, shift, m_tile, act_slope, out_dtype):
    vmem_limit, _ = _vmem_budget()
    n, cout_pad, m_pad = y.shape
    n_m = m_pad // m_tile
    return pl.pallas_call(
        functools.partial(_bn_affine_kernel, act_slope=act_slope),
        out_shape=jax.ShapeDtypeStruct((n, cout_pad, m_pad), out_dtype),
        grid_spec=pltpu.PrefetchScalarGridSpec(
            num_scalar_prefetch=0,
            grid=(n, n_m),
            in_specs=[
                pl.BlockSpec((1, cout_pad, m_tile), lambda b, m: (b, 0, m)),
                pl.BlockSpec((cout_pad, 1), lambda b, m: (0, 0)),
                pl.BlockSpec((cout_pad, 1), lambda b, m: (0, 0)),
            ],
            out_specs=pl.BlockSpec((1, cout_pad, m_tile), lambda b, m: (b, 0, m))),
        compiler_params=pltpu.CompilerParams(
            dimension_semantics=("parallel", "parallel"),
            vmem_limit_bytes=vmem_limit),
    )(y, scale.reshape(cout_pad, 1).astype(jnp.float32),
      shift.reshape(cout_pad, 1).astype(jnp.float32))


def conv2d_bias_pallas(x, weight, bias, *, stride=1, padding=0, dilation=1,
                       out_dtype=jnp.bfloat16):
    """Plain Conv2d with bias (layer_ful2[0]).  bf16 streaming, f32 accumulation."""
    cout = weight.shape[0]
    y, _, info = _conv2d_gemm_pallas(x, weight, bias, stride=stride,
                                     padding=padding, dilation=dilation)
    return _to_nchw(y, cout, info).astype(out_dtype)


def conv2d_bn_pallas(x, weight, gamma, beta, *, stride=1, padding=0, dilation=1,
                     act_slope=None, out_dtype=jnp.bfloat16):
    """BasicConv2d: Conv2d(bias=False) + BatchNorm2d (training-mode batch statistics,
    eps=1e-5, affine), optional fused LeakyReLU.  bf16 streams, f32 stats."""
    n = x.shape[0]
    cout = weight.shape[0]
    y, stats, info = _conv2d_gemm_pallas(x, weight, None, stride=stride,
                                         padding=padding, dilation=dilation)
    count = n * info["oh"] * info["ow"]
    total = jnp.sum(stats[:, :cout, :], axis=0)           # (Cout, 2) f32
    mean = total[:, 0] / count
    # TODO(synk): single-pass E[y^2]-E[y]^2 can cancel when |mean| >> std; switch to a
    #             shifted accumulation if that regime shows up with real checkpoints.
    var = jnp.maximum(total[:, 1] / count - mean * mean, 0.0)
    scale = gamma * jax.lax.rsqrt(var + BN_EPS)
    shift = beta - mean * scale

    cout_pad = y.shape[1]
    scale = jnp.pad(scale, (0, cout_pad - cout))
    shift = jnp.pad(shift, (0, cout_pad - cout))
    yb = _bn_affine_pallas(y, scale, shift, info["m_tile"], act_slope, out_dtype)
    return _to_nchw(yb, cout, info)


# --------------------------------------------------------------------------- references
# Precision-matched references: bf16 conv operands, f32 accumulation & statistics,
# bf16 intermediate store — mirrors the Pallas mixed-precision policy exactly.
def _conv2d_reference(x, w, bias=None, *, stride=1, padding=0, dilation=1,
                      out_dtype=jnp.bfloat16):
    y = jax.lax.conv_general_dilated(
        x.astype(jnp.bfloat16), w.astype(jnp.bfloat16), (stride, stride),
        [(padding, padding), (padding, padding)],
        rhs_dilation=(dilation, dilation),
        dimension_numbers=("NCHW", "OIHW", "NCHW"),
        preferred_element_type=jnp.float32)
    if bias is not None:
        y = y + bias.reshape(1, -1, 1, 1).astype(jnp.float32)
    return y.astype(out_dtype)


def _conv_bn_reference(x, w, gamma, beta, *, stride=1, padding=0, dilation=1,
                       act_slope=None, out_dtype=jnp.bfloat16):
    y = _conv2d_reference(x, w, None, stride=stride, padding=padding,
                          dilation=dilation, out_dtype=jnp.float32)
    mean = jnp.mean(y, axis=(0, 2, 3), keepdims=True)
    var = jnp.mean(jnp.square(y - mean), axis=(0, 2, 3), keepdims=True)
    scale = gamma.reshape(1, -1, 1, 1) * jax.lax.rsqrt(var + BN_EPS)
    shift = beta.reshape(1, -1, 1, 1) - mean * scale
    yq = y.astype(jnp.bfloat16).astype(jnp.float32)       # mirror the bf16 y store
    out = yq * scale + shift
    if act_slope is not None:
        out = jnp.where(out >= 0.0, out, out * act_slope)
    return out.astype(out_dtype)


# --------------------------------------------------------------------------- SAEd glue (plain JAX)
def _leaky_relu(x, slope=LEAKY_SLOPE):
    return jnp.where(x >= 0.0, x, x * slope)


def _upsample2x_bilinear_align_corners(x):
    """nn.Upsample(scale_factor=2, mode='bilinear', align_corners=True), NCHW."""
    n, c, h, w = x.shape
    oh, ow = 2 * h, 2 * w

    def _axis(osz, isz):
        pos = jnp.arange(osz, dtype=jnp.float32) * (isz - 1) / (osz - 1)
        lo = jnp.clip(jnp.floor(pos), 0, isz - 2).astype(jnp.int32)
        frac = pos - lo.astype(jnp.float32)
        return lo, lo + 1, frac

    h0, h1, fh = _axis(oh, h)
    w0, w1, fw = _axis(ow, w)
    xf = x.astype(jnp.float32)
    rows = (xf[:, :, h0, :] * (1.0 - fh)[None, None, :, None]
            + xf[:, :, h1, :] * fh[None, None, :, None])
    return (rows[:, :, :, w0] * (1.0 - fw)[None, None, None, :]
            + rows[:, :, :, w1] * fw[None, None, None, :])


def saed_forward(params, rgb, depth, *, use_pallas=True):
    """Forward of SAEd(channels_in); rgb has channels_in//2 channels, depth has
    channels_in channels at half spatial resolution.  Glue is shared by both paths."""
    conv_bn = conv2d_bn_pallas if use_pallas else _conv_bn_reference
    conv = conv2d_bias_pallas if use_pallas else _conv2d_reference
    b, c, _, _ = rgb.shape

    # se_depth = BasicConv2d(ci, 2ci, 1) -> Upsample(x2, bilinear, align_corners) ->
    #            BasicConv2d(2ci, ci//2, 3, padding=7, dilation=7)
    d = conv_bn(depth, params["sd1_w"], params["sd1_g"], params["sd1_b"])
    d = _upsample2x_bilinear_align_corners(d)
    d = conv_bn(d, params["sd2_w"], params["sd2_g"], params["sd2_b"],
                padding=7, dilation=7).astype(jnp.float32)

    rgb1 = conv_bn(rgb, params["sr_w"], params["sr_g"],
                   params["sr_b"]).astype(jnp.float32)

    s = d + rgb1
    rgbweight = jnp.mean(s - jnp.mean(s), axis=(2, 3))      # avg_pool(1).view(b,-1)
    h = _leaky_relu(rgbweight @ params["fc1_w"].T + params["fc1_b"])
    h = _leaky_relu(h @ params["fc2_w"].T + params["fc2_b"])
    sig_w = jax.nn.sigmoid(h.reshape(b, c, 1, 1))

    jout = rgb * jnp.mean(rgb, axis=1, keepdims=True) + rgb * sig_w
    c_out = d * jnp.mean(d, axis=1, keepdims=True) + d * sig_w

    x2 = jnp.concatenate([jout, c_out], axis=1)
    y2 = conv(x2, params["lf0_w"], params["lf0_b"], padding=1)   # Conv2d(ci, ci//4, 3, p=1)
    y2 = conv_bn(y2, params["lf1_w"], params["lf1_g"],
                 params["lf1_b"]).astype(jnp.float32)

    out = y2 * (rgb + d)
    out = conv_bn(out, params["sc_w"], params["sc_g"], params["sc_b"],
                  act_slope=LEAKY_SLOPE)                          # relu(secovn(out))
    return out.astype(jnp.float32)


# --------------------------------------------------------------------------- params / test
def init_params(key, channels_in):
    c = channels_in // 2
    q = channels_in // 4
    ks = jax.random.split(key, 20)

    def cw(k, co, ci, kh, kw):
        return 0.1 * jax.random.normal(k, (co, ci, kh, kw), jnp.float32)

    def bn(k, ch):
        kg, kb = jax.random.split(k)
        return (1.0 + 0.1 * jax.random.normal(kg, (ch,), jnp.float32),
                0.1 * jax.random.normal(kb, (ch,), jnp.float32))

    sr_g, sr_b = bn(ks[1], c)
    sd1_g, sd1_b = bn(ks[3], channels_in * 2)
    sd2_g, sd2_b = bn(ks[5], c)
    lf1_g, lf1_b = bn(ks[9], c)
    sc_g, sc_b = bn(ks[11], c)
    return {
        "sr_w": cw(ks[0], c, c, 1, 1), "sr_g": sr_g, "sr_b": sr_b,
        "sd1_w": cw(ks[2], channels_in * 2, channels_in, 1, 1), "sd1_g": sd1_g, "sd1_b": sd1_b,
        "sd2_w": cw(ks[4], c, channels_in * 2, 3, 3), "sd2_g": sd2_g, "sd2_b": sd2_b,
        "lf0_w": cw(ks[6], q, channels_in, 3, 3),
        "lf0_b": 0.1 * jax.random.normal(ks[7], (q,), jnp.float32),
        "lf1_w": cw(ks[8], c, q, 1, 1), "lf1_g": lf1_g, "lf1_b": lf1_b,
        "sc_w": cw(ks[10], c, c, 1, 1), "sc_g": sc_g, "sc_b": sc_b,
        "fc1_w": 0.1 * jax.random.normal(ks[12], (q, c), jnp.float32),
        "fc1_b": 0.1 * jax.random.normal(ks[13], (q,), jnp.float32),
        "fc2_w": 0.1 * jax.random.normal(ks[14], (c, q), jnp.float32),
        "fc2_b": 0.1 * jax.random.normal(ks[15], (c,), jnp.float32),
    }


if __name__ == "__main__":
    CHANNELS_IN = 8
    N, H, W = 2, 16, 16

    key = jax.random.PRNGKey(0)
    k_rgb, k_depth, k_params, k_t1, k_t2, k_t3, k_t4 = jax.random.split(key, 7)
    rgb = jax.random.normal(k_rgb, (N, CHANNELS_IN // 2, H, W), jnp.float32)
    depth = jax.random.normal(k_depth, (N, CHANNELS_IN, H // 2, W // 2), jnp.float32)
    params = init_params(k_params, CHANNELS_IN)

    # Kernel-level check: direct (no-im2col) 3x3 dilated Conv+BN+LeakyReLU against a
    # precision-matched lax.conv reference (bf16 operands, f32 accumulation/stats).
    xt = jax.random.normal(k_t1, (2, 6, 16, 16), jnp.float32)
    wt = 0.1 * jax.random.normal(k_t2, (8, 6, 3, 3), jnp.float32)
    gt = 1.0 + 0.1 * jax.random.normal(k_t3, (8,), jnp.float32)
    bt = 0.1 * jax.random.normal(k_t4, (8,), jnp.float32)
    got = conv2d_bn_pallas(xt, wt, gt, bt, padding=7, dilation=7,
                           act_slope=LEAKY_SLOPE).astype(jnp.float32)
    want = _conv_bn_reference(xt, wt, gt, bt, padding=7, dilation=7,
                              act_slope=LEAKY_SLOPE).astype(jnp.float32)
    assert got.shape == want.shape == (2, 8, 16, 16), got.shape
    err = float(jnp.max(jnp.abs(got - want)))
    assert jnp.allclose(got, want, atol=3e-2, rtol=3e-2), err

    # Full SAEd forward (Pallas convs) vs reference forward (lax convs, same
    # bf16-streaming / f32-statistics precision policy, shared glue).
    fwd = jax.jit(functools.partial(saed_forward, use_pallas=True))
    ref_fwd = jax.jit(functools.partial(saed_forward, use_pallas=False))

    out = jax.block_until_ready(fwd(params, rgb, depth))
    ref = jax.block_until_ready(ref_fwd(params, rgb, depth))

    assert out.shape == ref.shape == (N, CHANNELS_IN // 2, H, W)
    err = float(jnp.max(jnp.abs(out - ref)))
    assert jnp.allclose(out, ref, atol=3e-2, rtol=3e-2), err
    print("KERNEL_OK")
</pallas_src>

<mosaic_0001>
module attributes {stable_mosaic.version = 11 : i64} {
  func.func @_convkxk_direct_kernel(%arg0: i32, %arg1: memref<1x8x946xbf16, #tpu.memory_space<vmem>>, %arg2: memref<9x8x8xbf16, #tpu.memory_space<vmem>>, %arg3: memref<8x1xf32, #tpu.memory_space<vmem>>, %arg4: memref<1x512xf32, #tpu.memory_space<vmem>>, %arg5: memref<1x8x512xbf16, #tpu.memory_space<vmem>>, %arg6: memref<1x8x2xf32, #tpu.memory_space<vmem>>, %arg7: memref<8x512xf32, #tpu.memory_space<vmem>>) attributes {dimension_semantics = [#tpu.dimension_semantics<parallel>], iteration_bounds = array<i64: 2>, scalar_prefetch = 0 : i64, scratch_operands = 1 : i64, tpu.core_type = #tpu.core_type<tc>, window_params = [{transform_indices = @transform_0, window_bounds = array<i64: 1, 8, 946>}, {pipeline_mode = #tpu.pipeline_mode<synchronous>, transform_indices = @transform_1, window_bounds = array<i64: 9, 8, 8>}, {pipeline_mode = #tpu.pipeline_mode<synchronous>, transform_indices = @transform_2, window_bounds = array<i64: 8, 1>}, {pipeline_mode = #tpu.pipeline_mode<synchronous>, transform_indices = @transform_3, window_bounds = array<i64: 1, 512>}, {transform_indices = @transform_4, window_bounds = array<i64: 1, 8, 512>}, {transform_indices = @transform_5, window_bounds = array<i64: 1, 8, 2>}]} {
    %c0 = arith.constant 0 : index
    %c0_0 = arith.constant 0 : index
    %c0_1 = arith.constant 0 : index
    %0 = vector.load %arg1[%c0, %c0_0, %c0_1] : memref<1x8x946xbf16, #tpu.memory_space<vmem>>, vector<1x8x512xbf16>
    %1 = vector.shape_cast %0 : vector<1x8x512xbf16> to vector<8x512xbf16>
    %c0_2 = arith.constant 0 : index
    %c0_3 = arith.constant 0 : index
    %c0_4 = arith.constant 0 : index
    %2 = vector.load %arg2[%c0_2, %c0_3, %c0_4] : memref<9x8x8xbf16, #tpu.memory_space<vmem>>, vector<1x8x8xbf16>
    %3 = vector.shape_cast %2 : vector<1x8x8xbf16> to vector<8x8xbf16>
    %cst = arith.constant dense<0.000000e+00> : vector<8x512xf32>
    %4 = tpu.matmul %3, %1, %cst {dimension_numbers = #tpu.dot_dimension_numbers<[1], [0], [0], [1], [0, 0, 1, 1], [], []>} : vector<8x8xbf16>, vector<8x512xbf16>, vector<8x512xf32> -> vector<8x512xf32>
    %c0_5 = arith.constant 0 : index
    %c0_6 = arith.constant 0 : index
    %5 = vector.load %arg3[%c0_5, %c0_6] : memref<8x1xf32, #tpu.memory_space<vmem>>, vector<8x1xf32>
    %6 = vector.broadcast %5 : vector<8x1xf32> to vector<8x512xf32>
    %7 = arith.addf %4, %6 : vector<8x512xf32>
    %c0_7 = arith.constant 0 : index
    %c0_8 = arith.constant 0 : index
    %8 = vector.load %arg7[%c0_7, %c0_8] : memref<8x512xf32, #tpu.memory_space<vmem>>, vector<8x512xf32>
    tpu.vector_store %arg7[%c0_7, %c0_8], %7 {strides = array<i32>} : memref<8x512xf32, #tpu.memory_space<vmem>>, vector<8x512xf32>,
    %c0_9 = arith.constant 0 : index
    %c0_10 = arith.constant 0 : index
    %c7 = arith.constant 7 : index
    %9 = vector.load %arg1[%c0_9, %c0_10, %c7] : memref<1x8x946xbf16, #tpu.memory_space<vmem>>, vector<1x8x512xbf16>
    %10 = vector.shape_cast %9 : vector<1x8x512xbf16> to vector<8x512xbf16>
    %c1 = arith.constant 1 : index
    %c0_11 = arith.constant 0 : index
    %c0_12 = arith.constant 0 : index
    %11 = vector.load %arg2[%c1, %c0_11, %c0_12] : memref<9x8x8xbf16, #tpu.memory_space<vmem>>, vector<1x8x8xbf16>
    %12 = vector.shape_cast %11 : vector<1x8x8xbf16> to vector<8x8xbf16>
    %cst_13 = arith.constant dense<0.000000e+00> : vector<8x512xf32>
    %13 = tpu.matmul %12, %10, %cst_13 {dimension_numbers = #tpu.dot_dimension_numbers<[1], [0], [0], [1], [0, 0, 1, 1], [], []>} : vector<8x8xbf16>, vector<8x512xbf16>, vector<8x512xf32> -> vector<8x512xf32>
    %c0_14 = arith.constant 0 : index
    %c0_15 = arith.constant 0 : index
    %14 = vector.load %arg7[%c0_14, %c0_15] : memref<8x512xf32, #tpu.memory_space<vmem>>, vector<8x512xf32>
    %15 = arith.addf %14, %13 : vector<8x512xf32>
    %c0_16 = arith.constant 0 : index
    %c0_17 = arith.constant 0 : index
    %16 = vector.load %arg7[%c0_16, %c0_17] : memref<8x512xf32, #tpu.memory_space<vmem>>, vector<8x512xf32>
    tpu.vector_store %arg7[%c0_16, %c0_17], %15 {strides = array<i32>} : memref<8x512xf32, #tpu.memory_space<vmem>>, vector<8x512xf32>,
    %c0_18 = arith.constant 0 : index
    %c0_19 = arith.constant 0 : index
    %c14 = arith.constant 14 : index
    %17 = vector.load %arg1[%c0_18, %c0_19, %c14] : memref<1x8x946xbf16, #tpu.memory_space<vmem>>, vector<1x8x512xbf16>
    %18 = vector.shape_cast %17 : vector<1x8x512xbf16> to vector<8x512xbf16>
    %c2 = arith.constant 2 : index
    %c0_20 = arith.constant 0 : index
    %c0_21 = arith.constant 0 : index
    %19 = vector.load %arg2[%c2, %c0_20, %c0_21] : memref<9x8x8xbf16, #tpu.memory_space<vmem>>, vector<1x8x8xbf16>
    %20 = vector.shape_cast %19 : vector<1x8x8xbf16> to vector<8x8xbf16>
    %cst_22 = arith.constant dense<0.000000e+00> : vector<8x512xf32>
    %21 = tpu.matmul %20, %18, %cst_22 {dimension_numbers = #tpu.dot_dimension_numbers<[1], [0], [0], [1], [0, 0, 1, 1], [], []>} : vector<8x8xbf16>, vector<8x512xbf16>, vector<8x512xf32> -> vector<8x512xf32>
    %c0_23 = arith.constant 0 : index
    %c0_24 = arith.constant 0 : index
    %22 = vector.load %arg7[%c0_23, %c0_24] : memref<8x512xf32, #tpu.memory_space<vmem>>, vector<8x512xf32>
    %23 = arith.addf %22, %21 : vector<8x512xf32>
    %c0_25 = arith.constant 0 : index
    %c0_26 = arith.constant 0 : index
    %24 = vector.load %arg7[%c0_25, %c0_26] : memref<8x512xf32, #tpu.memory_space<vmem>>, vector<8x512xf32>
    tpu.vector_store %arg7[%c0_25, %c0_26], %23 {strides = array<i32>} : memref<8x512xf32, #tpu.memory_space<vmem>>, vector<8x512xf32>,
    %c0_27 = arith.constant 0 : index
    %c0_28 = arith.constant 0 : index
    %c210 = arith.constant 210 : index
    %25 = vector.load %arg1[%c0_27, %c0_28, %c210] : memref<1x8x946xbf16, #tpu.memory_space<vmem>>, vector<1x8x512xbf16>
    %26 = vector.shape_cast %25 : vector<1x8x512xbf16> to vector<8x512xbf16>
    %c3 = arith.constant 3 : index
    %c0_29 = arith.constant 0 : index
    %c0_30 = arith.constant 0 : index
    %27 = vector.load %arg2[%c3, %c0_29, %c0_30] : memref<9x8x8xbf16, #tpu.memory_space<vmem>>, vector<1x8x8xbf16>
    %28 = vector.shape_cast %27 : vector<1x8x8xbf16> to vector<8x8xbf16>
    %cst_31 = arith.constant dense<0.000000e+00> : vector<8x512xf32>
    %29 = tpu.matmul %28, %26, %cst_31 {dimension_numbers = #tpu.dot_dimension_numbers<[1], [0], [0], [1], [0, 0, 1, 1], [], []>} : vector<8x8xbf16>, vector<8x512xbf16>, vector<8x512xf32> -> vector<8x512xf32>
    %c0_32 = arith.constant 0 : index
    %c0_33 = arith.constant 0 : index
    %30 = vector.load %arg7[%c0_32, %c0_33] : memref<8x512xf32, #tpu.memory_space<vmem>>, vector<8x512xf32>
    %31 = arith.addf %30, %29 : vector<8x512xf32>
    %c0_34 = arith.constant 0 : index
    %c0_35 = arith.constant 0 : index
    %32 = vector.load %arg7[%c0_34, %c0_35] : memref<8x512xf32, #tpu.memory_space<vmem>>, vector<8x512xf32>
    tpu.vector_store %arg7[%c0_34, %c0_35], %31 {strides = array<i32>} : memref<8x512xf32, #tpu.memory_space<vmem>>, vector<8x512xf32>,
    %c0_36 = arith.constant 0 : index
    %c0_37 = arith.constant 0 : index
    %c217 = arith.constant 217 : index
    %33 = vector.load %arg1[%c0_36, %c0_37, %c217] : memref<1x8x946xbf16, #tpu.memory_space<vmem>>, vector<1x8x512xbf16>
    %34 = vector.shape_cast %33 : vector<1x8x512xbf16> to vector<8x512xbf16>
    %c4 = arith.constant 4 : index
    %c0_38 = arith.constant 0 : index
    %c0_39 = arith.constant 0 : index
    %35 = vector.load %arg2[%c4, %c0_38, %c0_39] : memref<9x8x8xbf16, #tpu.memory_space<vmem>>, vector<1x8x8xbf16>
    %36 = vector.shape_cast %35 : vector<1x8x8xbf16> to vector<8x8xbf16>
    %cst_40 = arith.constant dense<0.000000e+00> : vector<8x512xf32>
    %37 = tpu.matmul %36, %34, %cst_40 {dimension_numbers = #tpu.dot_dimension_numbers<[1], [0], [0], [1], [0, 0, 1, 1], [], []>} : vector<8x8xbf16>, vector<8x512xbf16>, vector<8x512xf32> -> vector<8x512xf32>
    %c0_41 = arith.constant 0 : index
    %c0_42 = arith.constant 0 : index
    %38 = vector.load %arg7[%c0_41, %c0_42] : memref<8x512xf32, #tpu.memory_space<vmem>>, vector<8x512xf32>
    %39 = arith.addf %38, %37 : vector<8x512xf32>
    %c0_43 = arith.constant 0 : index
    %c0_44 = arith.constant 0 : index
    %40 = vector.load %arg7[%c0_43, %c0_44] : memref<8x512xf32, #tpu.memory_space<vmem>>, vector<8x512xf32>
    tpu.vector_store %arg7[%c0_43, %c0_44], %39 {strides = array<i32>} : memref<8x512xf32, #tpu.memory_space<vmem>>, vector<8x512xf32>,
    %c0_45 = arith.constant 0 : index
    %c0_46 = arith.constant 0 : index
    %c224 = arith.constant 224 : index
    %41 = vector.load %arg1[%c0_45, %c0_46, %c224] : memref<1x8x946xbf16, #tpu.memory_space<vmem>>, vector<1x8x512xbf16>
    %42 = vector.shape_cast %41 : vector<1x8x512xbf16> to vector<8x512xbf16>
    %c5 = arith.constant 5 : index
    %c0_47 = arith.constant 0 : index
    %c0_48 = arith.constant 0 : index
    %43 = vector.load %arg2[%c5, %c0_47, %c0_48] : memref<9x8x8xbf16, #tpu.memory_space<vmem>>, vector<1x8x8xbf16>
    %44 = vector.shape_cast %43 : vector<1x8x8xbf16> to vector<8x8xbf16>
    %cst_49 = arith.constant dense<0.000000e+00> : vector<8x512xf32>
    %45 = tpu.matmul %44, %42, %cst_49 {dimension_numbers = #tpu.dot_dimension_numbers<[1], [0], [0], [1], [0, 0, 1, 1], [], []>} : vector<8x8xbf16>, vector<8x512xbf16>, vector<8x512xf32> -> vector<8x512xf32>
    %c0_50 = arith.constant 0 : index
    %c0_51 = arith.constant 0 : index
    %46 = vector.load %arg7[%c0_50, %c0_51] : memref<8x512xf32, #tpu.memory_space<vmem>>, vector<8x512xf32>
    %47 = arith.addf %46, %45 : vector<8x512xf32>
    %c0_52 = arith.constant 0 : index
    %c0_53 = arith.constant 0 : index
    %48 = vector.load %arg7[%c0_52, %c0_53] : memref<8x512xf32, #tpu.memory_space<vmem>>, vector<8x512xf32>
    tpu.vector_store %arg7[%c0_52, %c0_53], %47 {strides = array<i32>} : memref<8x512xf32, #tpu.memory_space<vmem>>, vector<8x512xf32>,
    %c0_54 = arith.constant 0 : index
    %c0_55 = arith.constant 0 : index
    %c420 = arith.constant 420 : index
    %49 = vector.load %arg1[%c0_54, %c0_55, %c420] : memref<1x8x946xbf16, #tpu.memory_space<vmem>>, vector<1x8x512xbf16>
    %50 = vector.shape_cast %49 : vector<1x8x512xbf16> to vector<8x512xbf16>
    %c6 = arith.constant 6 : index
    %c0_56 = arith.constant 0 : index
    %c0_57 = arith.constant 0 : index
    %51 = vector.load %arg2[%c6, %c0_56, %c0_57] : memref<9x8x8xbf16, #tpu.memory_space<vmem>>, vector<1x8x8xbf16>
    %52 = vector.shape_cast %51 : vector<1x8x8xbf16> to vector<8x8xbf16>
    %cst_58 = arith.constant dense<0.000000e+00> : vector<8x512xf32>
    %53 = tpu.matmul %52, %50, %cst_58 {dimension_numbers = #tpu.dot_dimension_numbers<[1], [0], [0], [1], [0, 0, 1, 1], [], []>} : vector<8x8xbf16>, vector<8x512xbf16>, vector<8x512xf32> -> vector<8x512xf32>
    %c0_59 = arith.constant 0 : index
    %c0_60 = arith.constant 0 : index
    %54 = vector.load %arg7[%c0_59, %c0_60] : memref<8x512xf32, #tpu.memory_space<vmem>>, vector<8x512xf32>
    %55 = arith.addf %54, %53 : vector<8x512xf32>
    %c0_61 = arith.constant 0 : index
    %c0_62 = arith.constant 0 : index
    %56 = vector.load %arg7[%c0_61, %c0_62] : memref<8x512xf32, #tpu.memory_space<vmem>>, vector<8x512xf32>
    tpu.vector_store %arg7[%c0_61, %c0_62], %55 {strides = array<i32>} : memref<8x512xf32, #tpu.memory_space<vmem>>, vector<8x512xf32>,
    %c0_63 = arith.constant 0 : index
    %c0_64 = arith.constant 0 : index
    %c427 = arith.constant 427 : index
    %57 = vector.load %arg1[%c0_63, %c0_64, %c427] : memref<1x8x946xbf16, #tpu.memory_space<vmem>>, vector<1x8x512xbf16>
    %58 = vector.shape_cast %57 : vector<1x8x512xbf16> to vector<8x512xbf16>
    %c7_65 = arith.constant 7 : index
    %c0_66 = arith.constant 0 : index
    %c0_67 = arith.constant 0 : index
    %59 = vector.load %arg2[%c7_65, %c0_66, %c0_67] : memref<9x8x8xbf16, #tpu.memory_space<vmem>>, vector<1x8x8xbf16>
    %60 = vector.shape_cast %59 : vector<1x8x8xbf16> to vector<8x8xbf16>
    %cst_68 = arith.constant dense<0.000000e+00> : vector<8x512xf32>
    %61 = tpu.matmul %60, %58, %cst_68 {dimension_numbers = #tpu.dot_dimension_numbers<[1], [0], [0], [1], [0, 0, 1, 1], [], []>} : vector<8x8xbf16>, vector<8x512xbf16>, vector<8x512xf32> -> vector<8x512xf32>
    %c0_69 = arith.constant 0 : index
    %c0_70 = arith.constant 0 : index
    %62 = vector.load %arg7[%c0_69, %c0_70] : memref<8x512xf32, #tpu.memory_space<vmem>>, vector<8x512xf32>
    %63 = arith.addf %62, %61 : vector<8x512xf32>
    %c0_71 = arith.constant 0 : index
    %c0_72 = arith.constant 0 : index
    %64 = vector.load %arg7[%c0_71, %c0_72] : memref<8x512xf32, #tpu.memory_space<vmem>>, vector<8x512xf32>
    tpu.vector_store %arg7[%c0_71, %c0_72], %63 {strides = array<i32>} : memref<8x512xf32, #tpu.memory_space<vmem>>, vector<8x512xf32>,
    %c0_73 = arith.constant 0 : index
    %c0_74 = arith.constant 0 : index
    %c434 = arith.constant 434 : index
    %65 = vector.load %arg1[%c0_73, %c0_74, %c434] : memref<1x8x946xbf16, #tpu.memory_space<vmem>>, vector<1x8x512xbf16>
    %66 = vector.shape_cast %65 : vector<1x8x512xbf16> to vector<8x512xbf16>
    %c8 = arith.constant 8 : index
    %c0_75 = arith.constant 0 : index
    %c0_76 = arith.constant 0 : index
    %67 = vector.load %arg2[%c8, %c0_75, %c0_76] : memref<9x8x8xbf16, #tpu.memory_space<vmem>>, vector<1x8x8xbf16>
    %68 = vector.shape_cast %67 : vector<1x8x8xbf16> to vector<8x8xbf16>
    %cst_77 = arith.constant dense<0.000000e+00> : vector<8x512xf32>
    %69 = tpu.matmul %68, %66, %cst_77 {dimension_numbers = #tpu.dot_dimension_numbers<[1], [0], [0], [1], [0, 0, 1, 1], [], []>} : vector<8x8xbf16>, vector<8x512xbf16>, vector<8x512xf32> -> vector<8x512xf32>
    %c0_78 = arith.constant 0 : index
    %c0_79 = arith.constant 0 : index
    %70 = vector.load %arg7[%c0_78, %c0_79] : memref<8x512xf32, #tpu.memory_space<vmem>>, vector<8x512xf32>
    %71 = arith.addf %70, %69 : vector<8x512xf32>
    %c0_80 = arith.constant 0 : index
    %c0_81 = arith.constant 0 : index
    %72 = vector.load %arg7[%c0_80, %c0_81] : memref<8x512xf32, #tpu.memory_space<vmem>>, vector<8x512xf32>
    tpu.vector_store %arg7[%c0_80, %c0_81], %71 {strides = array<i32>} : memref<8x512xf32, #tpu.memory_space<vmem>>, vector<8x512xf32>,
    %c0_82 = arith.constant 0 : index
    %c0_83 = arith.constant 0 : index
    %73 = vector.load %arg7[%c0_82, %c0_83] : memref<8x512xf32, #tpu.memory_space<vmem>>, vector<8x512xf32>
    %c0_84 = arith.constant 0 : index
    %c0_85 = arith.constant 0 : index
    %74 = vector.load %arg4[%c0_84, %c0_85] : memref<1x512xf32, #tpu.memory_space<vmem>>, vector<1x512xf32>
    %75 = vector.broadcast %74 : vector<1x512xf32> to vector<8x512xf32>
    %76 = arith.mulf %73, %75 : vector<8x512xf32>
    %77 = arith.truncf %76 : vector<8x512xf32> to vector<8x512xbf16>
    %c0_86 = arith.constant 0 : index
    %c0_87 = arith.constant 0 : index
    %c0_88 = arith.constant 0 : index
    %78 = vector.load %arg5[%c0_86, %c0_87, %c0_88] : memref<1x8x512xbf16, #tpu.memory_space<vmem>>, vector<1x8x512xbf16>
    %79 = vector.shape_cast %78 : vector<1x8x512xbf16> to vector<8x512xbf16>
    %80 = vector.shape_cast %77 : vector<8x512xbf16> to vector<1x8x512xbf16>
    tpu.vector_store %arg5[%c0_86, %c0_87, %c0_88], %80 {strides = array<i32>} : memref<1x8x512xbf16, #tpu.memory_space<vmem>>, vector<1x8x512xbf16>,
    %cst_89 = arith.constant dense<0.000000e+00> : vector<8xf32>
    %81 = vector.multi_reduction <add>, %76, %cst_89 [1] : vector<8x512xf32> to vector<8xf32>
    %82 = vector.shape_cast %81 : vector<8xf32> to vector<8x1xf32>
    %c0_90 = arith.constant 0 : index
    %c0_91 = arith.constant 0 : index
    %c0_92 = arith.constant 0 : index
    %83 = vector.load %arg6[%c0_90, %c0_91, %c0_92] : memref<1x8x2xf32, #tpu.memory_space<vmem>>, vector<1x8x1xf32>
    %84 = vector.shape_cast %83 : vector<1x8x1xf32> to vector<8x1xf32>
    %85 = vector.shape_cast %82 : vector<8x1xf32> to vector<1x8x1xf32>
    tpu.vector_store %arg6[%c0_90, %c0_91, %c0_92], %85 {strides = array<i32>} : memref<1x8x2xf32, #tpu.memory_space<vmem>>, vector<1x8x1xf32>,
    %86 = arith.mulf %76, %76 : vector<8x512xf32>
    %cst_93 = arith.constant dense<0.000000e+00> : vector<8xf32>
    %87 = vector.multi_reduction <add>, %86, %cst_93 [1] : vector<8x512xf32> to vector<8xf32>
    %88 = vector.shape_cast %87 : vector<8xf32> to vector<8x1xf32>
    %c0_94 = arith.constant 0 : index
    %c0_95 = arith.constant 0 : index
    %c1_96 = arith.constant 1 : index
    %89 = vector.load %arg6[%c0_94, %c0_95, %c1_96] : memref<1x8x2xf32, #tpu.memory_space<vmem>>, vector<1x8x1xf32>
    %90 = vector.shape_cast %89 : vector<1x8x1xf32> to vector<8x1xf32>
    %91 = vector.shape_cast %88 : vector<8x1xf32> to vector<1x8x1xf32>
    tpu.vector_store %arg6[%c0_94, %c0_95, %c1_96], %91 {strides = array<i32>} : memref<1x8x2xf32, #tpu.memory_space<vmem>>, vector<1x8x1xf32>,
    return
  }
  func.func @transform_0(%arg0: i32) -> (i32, i32, i32) {
    %c0_i32 = arith.constant 0 : i32
    %c0_i32_0 = arith.constant 0 : i32
    %c0_i32_1 = arith.constant 0 : i32
    return %arg0, %c0_i32, %c0_i32_0 : i32, i32, i32
  }
  func.func @transform_1(%arg0: i32) -> (i32, i32, i32) {
    %c0_i32 = arith.constant 0 : i32
    %c0_i32_0 = arith.constant 0 : i32
    %c0_i32_1 = arith.constant 0 : i32
    %c0_i32_2 = arith.constant 0 : i32
    return %c0_i32, %c0_i32_0, %c0_i32_1 : i32, i32, i32
  }
  func.func @transform_2(%arg0: i32) -> (i32, i32) {
    %c0_i32 = arith.constant 0 : i32
    %c0_i32_0 = arith.constant 0 : i32
    %c0_i32_1 = arith.constant 0 : i32
    return %c0_i32, %c0_i32_0 : i32, i32
  }
  func.func @transform_3(%arg0: i32) -> (i32, i32) {
    %c0_i32 = arith.constant 0 : i32
    %c0_i32_0 = arith.constant 0 : i32
    %c0_i32_1 = arith.constant 0 : i32
    return %c0_i32, %c0_i32_0 : i32, i32
  }
  func.func @transform_4(%arg0: i32) -> (i32, i32, i32) {
    %c0_i32 = arith.constant 0 : i32
    %c0_i32_0 = arith.constant 0 : i32
    %c0_i32_1 = arith.constant 0 : i32
    return %arg0, %c0_i32, %c0_i32_0 : i32, i32, i32
  }
  func.func @transform_5(%arg0: i32) -> (i32, i32, i32) {
    %c0_i32 = arith.constant 0 : i32
    %c0_i32_0 = arith.constant 0 : i32
    %c0_i32_1 = arith.constant 0 : i32
    return %arg0, %c0_i32, %c0_i32_0 : i32, i32, i32
  }
}

</mosaic_0001>

<llo_original>
// kernel: tpu_custom_call.1
$region0: #{tpu_custom_call.1}
  #allocation0 [shape = 'u32[]', space=smem, size = 0x4, offset = 0x4, fixed_abs, tag = 'smem constant byte address 0x4 - core index']
  #allocation1 [shape = 'u32[72,128]{1,0:T(1,128)}', space=vmem, size = 0x9000, scoped, tag = 'internal scratch']
  #allocation2 [shape = 'f32[8,512]{1,0:T(8,128)}', space=vmem, size = 0x4000, scoped, tag = 'scratch operand']
  %s0 = inlined_call_operand.vmem [shape: bf16[2,8,946], index: 0, kind: input, shape index: {}]
  %s1 = inlined_call_operand.vmem [shape: bf16[9,8,8], index: 1, kind: input, shape index: {}]
  %s2 = inlined_call_operand.vmem [shape: f32[8,1], index: 2, kind: input, shape index: {}]
  %s3 = inlined_call_operand.vmem [shape: f32[1,512], index: 3, kind: input, shape index: {}]
  %s4 = inlined_call_operand.hbm [shape: bf16[2,8,512], index: 4, kind: output, shape index: {0}]
  %s5 = inlined_call_operand.vmem [shape: f32[2,8,2], index: 5, kind: output, shape index: {1}]
  %6 = xla_tuple %s4, %s5
  %s7 = sld [smem:[#allocation0]]
  $region57: #{tpu_custom_call.1} parent=0
    _
  %s9 = ssub.s32 1, %s7
  %s10 = scalar_select 0, %s9, %s7
  $region1: #{tpu_custom_call.1} parent=0
    #allocation3 [shape = 'u8[16384]{0}', space=vmem, size = 0x4000, scoped, tag = 'output window, operand 0']
    #allocation4 [shape = 's32[2]{0}', space=sflag, size = 0x8, scoped, tag = 'scoped memory for tpu_custom_call.1']
    %11 = vsyncpa [#allocation4], 0
    %s12 = scalar_lea.sflag [#allocation4], 1
    %13 = vsyncpa %s12, 0
    loop: start=0, step=1, limit=4
    $region2: #{tpu_custom_call.1} parent=1 // loop_pre_header
      _
    $region3: #{tpu_custom_call.1} parent=1 // loop_header
      %s15 = sphi 0, %s19
      %p16 = scmp.ge.s32.totalorder %s15, 4
      %s25 = sphi 0, %s27
      %s28 = sphi 0, %s25
      %s29 = sphi 0, %s28
      %s45 = sphi 0, %s29
      %s49 = sphi 0, %s49
      %s51 = sphi 0, %s49
      %s52 = sphi 0, %s51
      %s66 = sphi 0, %s52
      %s70 = sphi 0, %s70
      %s72 = sphi 0, %s70
      %s73 = sphi 0, %s72
      %s87 = sphi 0, %s73
      %s91 = sphi 0, %s91
      %s93 = sphi 0, %s91
      %s94 = sphi 0, %s93
      %s108 = sphi 0, %s94
      %s114 = sphi 0, %s116
      %s117 = sphi 0, %s114
      %s118 = sphi 0, %s117
      %s134 = sphi 0, %s118
      %s140 = sphi 0, %s142
      %s143 = sphi 0, %s140
      %s144 = sphi 0, %s143
      %s160 = sphi 0, %s144
    $region4: #{tpu_custom_call.1} parent=1 // loop_header_branch
      %18 = sbr.rel (%p16) target = $region8
    $region5: #{tpu_custom_call.1} parent=1 // loop_body
      %s20 = ssub.s32 %s15, 1
      %s21 = ssub.s32 %s15, 2
      %s22 = sadd.s32 %s15, 1
      %s23 = ssub.s32 %s15, %s22
      %p24 = scmp.eq.s32.totalorder %s23, 0
      %s26 = sadd.s32 %s25, 1
      %s27 = scalar_select %p24, %s25, %s26
      %p30 = pneg %p24
      %p31 = scmp.eq.s32.totalorder %s15, 1
      %p32 = por %p30, %p31
      %p33 = scmp.ne.s32.totalorder %s25, %s28
      %p34 = scmp.eq.s32.totalorder %s15, 0
      %p35 = por %p33, %p34
      %p36 = scmp.ne.s32.totalorder %s25, %s28
      %p37 = scmp.eq.s32.totalorder %s20, 1
      %p38 = por %p36, %p37
      %p39 = scmp.ne.s32.totalorder %s28, %s29
      %p40 = scmp.eq.s32.totalorder %s20, 0
      %p41 = por %p39, %p40
      %p42 = scmp.ne.s32.totalorder %s28, %s29
      %p43 = scmp.eq.s32.totalorder %s21, 1
      %p44 = por %p42, %p43
      %p46 = scmp.ne.s32.totalorder %s29, %s45
      %p47 = scmp.eq.s32.totalorder %s21, 0
      %p48 = por %p46, %p47
      %s50 = sadd.s32 %s49, 1
      %p53 = scmp.eq.s32.totalorder %s15, 1
      %p54 = scmp.ne.s32.totalorder %s49, %s51
      %p55 = scmp.eq.s32.totalorder %s15, 0
      %p56 = por %p54, %p55
      %p57 = scmp.ne.s32.totalorder %s49, %s51
      %p58 = scmp.eq.s32.totalorder %s20, 1
      %p59 = por %p57, %p58
      %p60 = scmp.ne.s32.totalorder %s51, %s52
      %p61 = scmp.eq.s32.totalorder %s20, 0
      %p62 = por %p60, %p61
      %p63 = scmp.ne.s32.totalorder %s51, %s52
      %p64 = scmp.eq.s32.totalorder %s21, 1
      %p65 = por %p63, %p64
      %p67 = scmp.ne.s32.totalorder %s52, %s66
      %p68 = scmp.eq.s32.totalorder %s21, 0
      %p69 = por %p67, %p68
      %s71 = sadd.s32 %s70, 1
      %p74 = scmp.eq.s32.totalorder %s15, 1
      %p75 = scmp.ne.s32.totalorder %s70, %s72
      %p76 = scmp.eq.s32.totalorder %s15, 0
      %p77 = por %p75, %p76
      %p78 = scmp.ne.s32.totalorder %s70, %s72
      %p79 = scmp.eq.s32.totalorder %s20, 1
      %p80 = por %p78, %p79
      %p81 = scmp.ne.s32.totalorder %s72, %s73
      %p82 = scmp.eq.s32.totalorder %s20, 0
      %p83 = por %p81, %p82
      %p84 = scmp.ne.s32.totalorder %s72, %s73
      %p85 = scmp.eq.s32.totalorder %s21, 1
      %p86 = por %p84, %p85
      %p88 = scmp.ne.s32.totalorder %s73, %s87
      %p89 = scmp.eq.s32.totalorder %s21, 0
      %p90 = por %p88, %p89
      %s92 = sadd.s32 %s91, 1
      %p95 = scmp.eq.s32.totalorder %s15, 1
      %p96 = scmp.ne.s32.totalorder %s91, %s93
      %p97 = scmp.eq.s32.totalorder %s15, 0
      %p98 = por %p96, %p97
      %p99 = scmp.ne.s32.totalorder %s91, %s93
      %p100 = scmp.eq.s32.totalorder %s20, 1
      %p101 = por %p99, %p100
      %p102 = scmp.ne.s32.totalorder %s93, %s94
      %p103 = scmp.eq.s32.totalorder %s20, 0
      %p104 = por %p102, %p103
      %p105 = scmp.ne.s32.totalorder %s93, %s94
      %p106 = scmp.eq.s32.totalorder %s21, 1
      %p107 = por %p105, %p106
      %p109 = scmp.ne.s32.totalorder %s94, %s108
      %p110 = scmp.eq.s32.totalorder %s21, 0
      %p111 = por %p109, %p110
      %s112 = ssub.s32 %s15, %s22
      %p113 = scmp.eq.s32.totalorder %s112, 0
      %s115 = sadd.s32 %s114, 1
      %s116 = scalar_select %p113, %s114, %s115
      %p119 = pneg %p113
      %p120 = scmp.eq.s32.totalorder %s15, 1
      %p121 = por %p119, %p120
      %p122 = scmp.ne.s32.totalorder %s114, %s117
      %p123 = scmp.eq.s32.totalorder %s15, 0
      %p124 = por %p122, %p123
      %p125 = scmp.ne.s32.totalorder %s114, %s117
      %p126 = scmp.eq.s32.totalorder %s20, 1
      %p127 = por %p125, %p126
      %p128 = scmp.ne.s32.totalorder %s117, %s118
      %p129 = scmp.eq.s32.totalorder %s20, 0
      %p130 = por %p128, %p129
      %p131 = scmp.ne.s32.totalorder %s117, %s118
      %p132 = scmp.eq.s32.totalorder %s21, 1
      %p133 = por %p131, %p132
      %p135 = scmp.ne.s32.totalorder %s118, %s134
      %p136 = scmp.eq.s32.totalorder %s21, 0
      %p137 = por %p135, %p136
      %s138 = ssub.s32 %s15, %s22
      %p139 = scmp.eq.s32.totalorder %s138, 0
      %s141 = sadd.s32 %s140, 1
      %s142 = scalar_select %p139, %s140, %s141
      %p145 = pneg %p139
      %p146 = scmp.eq.s32.totalorder %s15, 1
      %p147 = por %p145, %p146
      %p148 = scmp.ne.s32.totalorder %s140, %s143
      %p149 = scmp.eq.s32.totalorder %s15, 0
      %p150 = por %p148, %p149
      %p151 = scmp.ne.s32.totalorder %s140, %s143
      %p152 = scmp.eq.s32.totalorder %s20, 1
      %p153 = por %p151, %p152
      %p154 = scmp.ne.s32.totalorder %s143, %s144
      %p155 = scmp.eq.s32.totalorder %s20, 0
      %p156 = por %p154, %p155
      %p157 = scmp.ne.s32.totalorder %s143, %s144
      %p158 = scmp.eq.s32.totalorder %s21, 1
      %p159 = por %p157, %p158
      %p161 = scmp.ne.s32.totalorder %s144, %s160
      %p162 = scmp.eq.s32.totalorder %s21, 0
      %p163 = por %p161, %p162
      %p164 = scmp.le.s32.totalorder 1, %s15
      %p165 = scmp.lt.s32.totalorder %s15, 3
      %p166 = pnand %p164, %p165
      %p167 = pneg %p166
      // Predicated region
      $region9: #{tpu_custom_call.1} parent=5 // pred_check
        _
      $region10: #{tpu_custom_call.1} parent=5 // pred_check_branch
        %169 = sbr.rel (%p166) target = $region12
      $region11: #{tpu_custom_call.1} parent=5 // pred_region
        %s170 = ssub.s32 %s15, 1
        // Predicated region
        $region13: #{tpu_custom_call.1} parent=11 // pred_check
          %p171 = pneg %p62
        $region14: #{tpu_custom_call.1} parent=11 // pred_check_branch
          %173 = sbr.rel (%p171) target = $region16
        $region15: #{tpu_custom_call.1} parent=11 // pred_region
          _
        $region16: #{tpu_custom_call.1} parent=11 // pred_fallthru
          _
        // Predicated region
        $region17: #{tpu_custom_call.1} parent=11 // pred_check
          %p174 = pneg %p83
        $region18: #{tpu_custom_call.1} parent=11 // pred_check_branch
          %176 = sbr.rel (%p174) target = $region20
        $region19: #{tpu_custom_call.1} parent=11 // pred_region
          _
        $region20: #{tpu_custom_call.1} parent=11 // pred_fallthru
          _
        // Predicated region
        $region21: #{tpu_custom_call.1} parent=11 // pred_check
          %p177 = pneg %p104
        $region22: #{tpu_custom_call.1} parent=11 // pred_check_branch
          %179 = sbr.rel (%p177) target = $region24
        $region23: #{tpu_custom_call.1} parent=11 // pred_region
          _
        $region24: #{tpu_custom_call.1} parent=11 // pred_fallthru
          _
      $region12: #{tpu_custom_call.1} parent=5 // pred_fallthru
        _
      %p180 = scmp.lt.s32.totalorder %s15, 2
      // Predicated region
      $region25: #{tpu_custom_call.1} parent=5 // pred_check
        %p181 = pneg %p180
      $region26: #{tpu_custom_call.1} parent=5 // pred_check_branch
        %183 = sbr.rel (%p181) target = $region28
      $region27: #{tpu_custom_call.1} parent=5 // pred_region
        // Predicated region
        $region29: #{tpu_custom_call.1} parent=27 // pred_check
          %p184 = pneg %p35
        $region30: #{tpu_custom_call.1} parent=27 // pred_check_branch
          %186 = sbr.rel (%p184) target = $region32
        $region31: #{tpu_custom_call.1} parent=27 // pred_region
          %p187 = scmp.lt.s32.totalorder %s15, 1
          %s188 = scalar_select %p187, %s15, 1
          %s189 = smul.addr %s188, 8
          %s190 = smul.addr %s189, 4
          %s191 = scalar_lea.vmem %s0, %s190
        $region32: #{tpu_custom_call.1} parent=27 // pred_fallthru
          _
      $region28: #{tpu_custom_call.1} parent=5 // pred_fallthru
        _
      %p192 = scmp.le.s32.totalorder 1, %s15
      %p193 = scmp.lt.s32.totalorder %s15, 3
      %p194 = pnand %p192, %p193
      %p195 = pneg %p194
      // Predicated region
      $region33: #{tpu_custom_call.1} parent=5 // pred_check
        _
      $region34: #{tpu_custom_call.1} parent=5 // pred_check_branch
        %197 = sbr.rel (%p194) target = $region36
      $region35: #{tpu_custom_call.1} parent=5 // pred_region
        %s198 = ssub.s32 %s15, 1
        %p199 = scmp.lt.s32.totalorder %s20, 1
        %s200 = scalar_select %p199, %s20, 1
        %s201 = smul.addr %s200, 8
        %s202 = smul.addr %s201, 4
        %s203 = scalar_lea.vmem %s0, %s202
        %p204 = pneg %p41
        %p205 = pneg %p38
        %p206 = pneg %p62
        %p207 = pneg %p59
        %p208 = pneg %p83
        %p209 = pneg %p80
        %p210 = pneg %p104
        %p211 = pneg %p101
        %p212 = pneg %p130
        %p213 = pneg %p127
        %s214 = sand.u32 %s117, 1
        %s215 = scalar_lea.sflag [#allocation4], %s214
        %s216 = sand.u32 %s117, 1
        %s217 = smul.addr %s216, 16
        %s218 = scalar_lea.vmem [#allocation3], %s217
        %p219 = pneg %p156
        %p220 = pneg %p153
        %p221 = scmp.lt.s32.totalorder %s20, 1
        %s222 = scalar_select %p221, %s20, 1
        %s223 = smul.addr %s222, 8
        %s224 = scalar_lea.vmem %s5, %s223
        %p225 = scmp.lt.s32.totalorder %s20, 1
        %s226 = scalar_select %p225, %s20, 1
        %s227 = smul.addr %s226, 8
        %s228 = smul.addr %s227, 4
        %s229 = scalar_lea.vmem %s0, %s228
        %p230 = scmp.lt.s32.totalorder %s20, 1
        %s231 = scalar_select %p230, %s20, 1
        %s232 = smul.addr %s231, 8
        %s233 = scalar_lea.vmem %s5, %s232
        %v235 = vld [vmem:[%s229] sm:$0xff]
        %v236 = vld [vmem:[%s229 + $0x8] sm:$0xff]
        %v237 = vld [vmem:[%s1] sm:$0xf]
        %v238 = vld [vmem:[%s2] sm:$0xff]
        %240 = vset.pattern.permute.xlu0 0
        %241 = vperm.xlu0 %240, %v238
        %v242 = vpop.permute.xlu0 %241
        %v246 = vunpack.c.l.b16 %v235
        %v247 = vunpack.c.h.b16 %v235
        %v248 = vunpack.c.l.b16 %v236
        %v249 = vunpack.c.h.b16 %v236
        %v250 = vpack.c.b16 %v246, %v246
        %v251 = vpack.c.b16 %v247, %v247
        %v252 = vpack.c.b16 %v248, %v248
        %v253 = vpack.c.b16 %v249, %v249
        %vm254 = vcmask 64512
        %v256 = vsel %vm254, %v237, 0
        %vm258 = vcmask 1043456
        %v260 = vsel %vm258, %v250, 0
        %v263 = vsel %vm258, %v251, 0
        %v266 = vsel %vm258, %v252, 0
        %v269 = vsel %vm258, %v253, 0
        %271 = vmatpush.bf16.msra.mxu0 0
        %272 = vmatpush.bf16.msra.mxu0 0
        %273 = vmatpush.bf16.msra.mxu0 0
        %274 = vmatpush.bf16.msra.mxu0 0
        %275 = vmatpush.bf16.msra.mxu0 0
        %276 = vmatpush.bf16.msra.mxu0 0
        %277 = vmatpush.bf16.msra.mxu0 0
        %278 = vmatpush.bf16.msra.mxu0 %v260
        %279 = vmatmul.bf16.gmra.mxu0 %v256
        %v280 = vpop.f32.mrf.mxu0
        %v281 = vadd.f32 %v242, %v280
        %v282 = vpop.f32.mrf.mxu0
        %283 = vdwg.mxu0
        %284 = vmatpush.bf16.msra.mxu0 0
        %285 = vmatpush.bf16.msra.mxu0 0
        %286 = vmatpush.bf16.msra.mxu0 0
        %287 = vmatpush.bf16.msra.mxu0 0
        %288 = vmatpush.bf16.msra.mxu0 0
        %289 = vmatpush.bf16.msra.mxu0 0
        %290 = vmatpush.bf16.msra.mxu0 0
        %291 = vmatpush.bf16.msra.mxu0 %v263
        %292 = vmatmul.bf16.gmra.mxu0 %v256
        %v293 = vpop.f32.mrf.mxu0
        %v294 = vadd.f32 %v242, %v293
        %v295 = vpop.f32.mrf.mxu0
        %296 = vdwg.mxu0
        %297 = vmatpush.bf16.msra.mxu0 0
        %298 = vmatpush.bf16.msra.mxu0 0
        %299 = vmatpush.bf16.msra.mxu0 0
        %300 = vmatpush.bf16.msra.mxu0 0
        %301 = vmatpush.bf16.msra.mxu0 0
        %302 = vmatpush.bf16.msra.mxu0 0
        %303 = vmatpush.bf16.msra.mxu0 0
        %304 = vmatpush.bf16.msra.mxu0 %v266
        %305 = vmatmul.bf16.gmra.mxu0 %v256
        %v306 = vpop.f32.mrf.mxu0
        %v307 = vadd.f32 %v242, %v306
        %v308 = vpop.f32.mrf.mxu0
        %309 = vdwg.mxu0
        %310 = vmatpush.bf16.msra.mxu0 0
        %311 = vmatpush.bf16.msra.mxu0 0
        %312 = vmatpush.bf16.msra.mxu0 0
        %313 = vmatpush.bf16.msra.mxu0 0
        %314 = vmatpush.bf16.msra.mxu0 0
        %315 = vmatpush.bf16.msra.mxu0 0
        %316 = vmatpush.bf16.msra.mxu0 0
        %317 = vmatpush.bf16.msra.mxu0 %v269
        %318 = vmatmul.bf16.gmra.mxu0 %v256
        %v319 = vpop.f32.mrf.mxu0
        %v320 = vadd.f32 %v242, %v319
        %v321 = vpop.f32.mrf.mxu0
        %322 = vdwg.mxu0
        %323 = vst [vmem:[#allocation2] sm:$0xff] %v281
        %324 = vst [vmem:[#allocation2 + $0x8] sm:$0xff] %v294
        %325 = vst [vmem:[#allocation2 + $0x10] sm:$0xff] %v307
        %326 = vst [vmem:[#allocation2 + $0x18] sm:$0xff] %v320
        %v327 = vld [vmem:[%s229] sm:$0xff]
        %v328 = vld [vmem:[%s229 + $0x8] sm:$0xff]
        %v329 = vld [vmem:[%s229 + $0x10] sm:$0xf]
        %s330 = scalar_lea.vmem %s1, 4
        %v331 = vld [vmem:[%s330] sm:$0xf]
        %v335 = vunpack.c.l.b16 %v327
        %v336 = vunpack.c.h.b16 %v327
        %v337 = vunpack.c.l.b16 %v328
        %v338 = vunpack.c.h.b16 %v328
        %v339 = vunpack.c.l.b16 %v329
        %v340 = vpack.c.b16 %v335, %v335
        %v341 = vpack.c.b16 %v336, %v336
        %v342 = vpack.c.b16 %v337, %v337
        %v343 = vpack.c.b16 %v338, %v338
        %v344 = vpack.c.b16 %v339, %v339
        %345 = vrot.lane.b32.xlu0 %v340, 121
        %v346 = vpop.permute.xlu0 %345
        %347 = vrot.lane.b32.xlu0 %v341, 121
        %v348 = vpop.permute.xlu0 %347
        %349 = vrot.lane.b32.xlu0 %v342, 121
        %v350 = vpop.permute.xlu0 %349
        %351 = vrot.lane.b32.xlu0 %v343, 121
        %v352 = vpop.permute.xlu0 %351
        %353 = vrot.lane.b32.xlu0 %v344, 121
        %v354 = vpop.permute.xlu0 %353
        %vm355 = vcmask 990208
        %v356 = vsel %vm355, %v346, %v348
        %v357 = vsel %vm355, %v348, %v350
        %v358 = vsel %vm355, %v350, %v352
        %v359 = vsel %vm355, %v352, %v354
        %v361 = vsel %vm254, %v331, 0
        %v364 = vsel %vm258, %v356, 0
        %v367 = vsel %vm258, %v357, 0
        %v370 = vsel %vm258, %v358, 0
        %v373 = vsel %vm258, %v359, 0
        %375 = vmatpush.bf16.msra.mxu0 0
        %376 = vmatpush.bf16.msra.mxu0 0
        %377 = vmatpush.bf16.msra.mxu0 0
        %378 = vmatpush.bf16.msra.mxu0 0
        %379 = vmatpush.bf16.msra.mxu0 0
        %380 = vmatpush.bf16.msra.mxu0 0
        %381 = vmatpush.bf16.msra.mxu0 0
        %382 = vmatpush.bf16.msra.mxu0 %v364
        %383 = vmatmul.bf16.gmra.mxu0 %v361
        %v384 = vpop.f32.mrf.mxu0
        %v385 = vadd.f32 0.0, %v384
        %v386 = vpop.f32.mrf.mxu0
        %387 = vdwg.mxu0
        %388 = vmatpush.bf16.msra.mxu0 0
        %389 = vmatpush.bf16.msra.mxu0 0
        %390 = vmatpush.bf16.msra.mxu0 0
        %391 = vmatpush.bf16.msra.mxu0 0
        %392 = vmatpush.bf16.msra.mxu0 0
        %393 = vmatpush.bf16.msra.mxu0 0
        %394 = vmatpush.bf16.msra.mxu0 0
        %395 = vmatpush.bf16.msra.mxu0 %v367
        %396 = vmatmul.bf16.gmra.mxu0 %v361
        %v397 = vpop.f32.mrf.mxu0
        %v398 = vadd.f32 0.0, %v397
        %v399 = vpop.f32.mrf.mxu0
        %400 = vdwg.mxu0
        %401 = vmatpush.bf16.msra.mxu0 0
        %402 = vmatpush.bf16.msra.mxu0 0
        %403 = vmatpush.bf16.msra.mxu0 0
        %404 = vmatpush.bf16.msra.mxu0 0
        %405 = vmatpush.bf16.msra.mxu0 0
        %406 = vmatpush.bf16.msra.mxu0 0
        %407 = vmatpush.bf16.msra.mxu0 0
        %408 = vmatpush.bf16.msra.mxu0 %v370
        %409 = vmatmul.bf16.gmra.mxu0 %v361
        %v410 = vpop.f32.mrf.mxu0
        %v411 = vadd.f32 0.0, %v410
        %v412 = vpop.f32.mrf.mxu0
        %413 = vdwg.mxu0
        %414 = vmatpush.bf16.msra.mxu0 0
        %415 = vmatpush.bf16.msra.mxu0 0
        %416 = vmatpush.bf16.msra.mxu0 0
        %417 = vmatpush.bf16.msra.mxu0 0
        %418 = vmatpush.bf16.msra.mxu0 0
        %419 = vmatpush.bf16.msra.mxu0 0
        %420 = vmatpush.bf16.msra.mxu0 0
        %421 = vmatpush.bf16.msra.mxu0 %v373
        %422 = vmatmul.bf16.gmra.mxu0 %v361
        %v423 = vpop.f32.mrf.mxu0
        %v424 = vadd.f32 0.0, %v423
        %v425 = vpop.f32.mrf.mxu0
        %426 = vdwg.mxu0
        %v427 = vld [vmem:[#allocation2] sm:$0xff]
        %v428 = vld [vmem:[#allocation2 + $0x8] sm:$0xff]
        %v429 = vld [vmem:[#allocation2 + $0x10] sm:$0xff]
        %v430 = vld [vmem:[#allocation2 + $0x18] sm:$0xff]
        %v431 = vadd.f32 %v427, %v385
        %v432 = vadd.f32 %v428, %v398
        %v433 = vadd.f32 %v429, %v411
        %v434 = vadd.f32 %v430, %v424
        %435 = vst [vmem:[#allocation2] sm:$0xff] %v431
        %436 = vst [vmem:[#allocation2 + $0x8] sm:$0xff] %v432
        %437 = vst [vmem:[#allocation2 + $0x10] sm:$0xff] %v433
        %438 = vst [vmem:[#allocation2 + $0x18] sm:$0xff] %v434
        %v439 = vld [vmem:[%s229] sm:$0xff]
        %v440 = vld [vmem:[%s229 + $0x8] sm:$0xff]
        %v441 = vld [vmem:[%s229 + $0x10] sm:$0xf]
        %s442 = scalar_lea.vmem %s1, 8
        %v443 = vld [vmem:[%s442] sm:$0xf]
        %v447 = vunpack.c.l.b16 %v439
        %v448 = vunpack.c.h.b16 %v439
        %v449 = vunpack.c.l.b16 %v440
        %v450 = vunpack.c.h.b16 %v440
        %v451 = vunpack.c.l.b16 %v441
        %v452 = vpack.c.b16 %v447, %v447
        %v453 = vpack.c.b16 %v448, %v448
        %v454 = vpack.c.b16 %v449, %v449
        %v455 = vpack.c.b16 %v450, %v450
        %v456 = vpack.c.b16 %v451, %v451
        %457 = vrot.lane.b32.xlu0 %v452, 114
        %v458 = vpop.permute.xlu0 %457
        %459 = vrot.lane.b32.xlu0 %v453, 114
        %v460 = vpop.permute.xlu0 %459
        %461 = vrot.lane.b32.xlu0 %v454, 114
        %v462 = vpop.permute.xlu0 %461
        %463 = vrot.lane.b32.xlu0 %v455, 114
        %v464 = vpop.permute.xlu0 %463
        %465 = vrot.lane.b32.xlu0 %v456, 114
        %v466 = vpop.permute.xlu0 %465
        %vm467 = vcmask 932864
        %v468 = vsel %vm467, %v458, %v460
        %v469 = vsel %vm467, %v460, %v462
        %v470 = vsel %vm467, %v462, %v464
        %v471 = vsel %vm467, %v464, %v466
        %v473 = vsel %vm254, %v443, 0
        %v476 = vsel %vm258, %v468, 0
        %v479 = vsel %vm258, %v469, 0
        %v482 = vsel %vm258, %v470, 0
        %v485 = vsel %vm258, %v471, 0
        %487 = vmatpush.bf16.msra.mxu0 0
        %488 = vmatpush.bf16.msra.mxu0 0
        %489 = vmatpush.bf16.msra.mxu0 0
        %490 = vmatpush.bf16.msra.mxu0 0
        %491 = vmatpush.bf16.msra.mxu0 0
        %492 = vmatpush.bf16.msra.mxu0 0
        %493 = vmatpush.bf16.msra.mxu0 0
        %494 = vmatpush.bf16.msra.mxu0 %v476
        %495 = vmatmul.bf16.gmra.mxu0 %v473
        %v496 = vpop.f32.mrf.mxu0
        %v497 = vadd.f32 0.0, %v496
        %v498 = vpop.f32.mrf.mxu0
        %499 = vdwg.mxu0
        %500 = vmatpush.bf16.msra.mxu0 0
        %501 = vmatpush.bf16.msra.mxu0 0
        %502 = vmatpush.bf16.msra.mxu0 0
        %503 = vmatpush.bf16.msra.mxu0 0
        %504 = vmatpush.bf16.msra.mxu0 0
        %505 = vmatpush.bf16.msra.mxu0 0
        %506 = vmatpush.bf16.msra.mxu0 0
        %507 = vmatpush.bf16.msra.mxu0 %v479
        %508 = vmatmul.bf16.gmra.mxu0 %v473
        %v509 = vpop.f32.mrf.mxu0
        %v510 = vadd.f32 0.0, %v509
        %v511 = vpop.f32.mrf.mxu0
        %512 = vdwg.mxu0
        %513 = vmatpush.bf16.msra.mxu0 0
        %514 = vmatpush.bf16.msra.mxu0 0
        %515 = vmatpush.bf16.msra.mxu0 0
        %516 = vmatpush.bf16.msra.mxu0 0
        %517 = vmatpush.bf16.msra.mxu0 0
        %518 = vmatpush.bf16.msra.mxu0 0
        %519 = vmatpush.bf16.msra.mxu0 0
        %520 = vmatpush.bf16.msra.mxu0 %v482
        %521 = vmatmul.bf16.gmra.mxu0 %v473
        %v522 = vpop.f32.mrf.mxu0
        %v523 = vadd.f32 0.0, %v522
        %v524 = vpop.f32.mrf.mxu0
        %525 = vdwg.mxu0
        %526 = vmatpush.bf16.msra.mxu0 0
        %527 = vmatpush.bf16.msra.mxu0 0
        %528 = vmatpush.bf16.msra.mxu0 0
        %529 = vmatpush.bf16.msra.mxu0 0
        %530 = vmatpush.bf16.msra.mxu0 0
        %531 = vmatpush.bf16.msra.mxu0 0
        %532 = vmatpush.bf16.msra.mxu0 0
        %533 = vmatpush.bf16.msra.mxu0 %v485
        %534 = vmatmul.bf16.gmra.mxu0 %v473
        %v535 = vpop.f32.mrf.mxu0
        %v536 = vadd.f32 0.0, %v535
        %v537 = vpop.f32.mrf.mxu0
        %538 = vdwg.mxu0
        %v539 = vld [vmem:[#allocation2] sm:$0xff]
        %v540 = vld [vmem:[#allocation2 + $0x8] sm:$0xff]
        %v541 = vld [vmem:[#allocation2 + $0x10] sm:$0xff]
        %v542 = vld [vmem:[#allocation2 + $0x18] sm:$0xff]
        %v543 = vadd.f32 %v539, %v497
        %v544 = vadd.f32 %v540, %v510
        %v545 = vadd.f32 %v541, %v523
        %v546 = vadd.f32 %v542, %v536
        %547 = vst [vmem:[#allocation2] sm:$0xff] %v543
        %548 = vst [vmem:[#allocation2 + $0x8] sm:$0xff] %v544
        %549 = vst [vmem:[#allocation2 + $0x10] sm:$0xff] %v545
        %550 = vst [vmem:[#allocation2 + $0x18] sm:$0xff] %v546
        %v551 = vld [vmem:[%s229 + $0x4] sm:$0xff]
        %v552 = vld [vmem:[%s229 + $0xc] sm:$0xff]
        %v553 = vld [vmem:[%s229 + $0x14] sm:$0xf]
        %s554 = scalar_lea.vmem %s1, 12
        %v555 = vld [vmem:[%s554] sm:$0xf]
        %v559 = vunpack.c.l.b16 %v551
        %v560 = vunpack.c.h.b16 %v551
        %v561 = vunpack.c.l.b16 %v552
        %v562 = vunpack.c.h.b16 %v552
        %v563 = vunpack.c.l.b16 %v553
        %v564 = vpack.c.b16 %v559, %v559
        %v565 = vpack.c.b16 %v560, %v560
        %v566 = vpack.c.b16 %v561, %v561
        %v567 = vpack.c.b16 %v562, %v562
        %v568 = vpack.c.b16 %v563, %v563
        %569 = vrot.lane.b32.xlu0 %v564, 46
        %v570 = vpop.permute.xlu0 %569
        %571 = vrot.lane.b32.xlu0 %v565, 46
        %v572 = vpop.permute.xlu0 %571
        %573 = vrot.lane.b32.xlu0 %v566, 46
        %v574 = vpop.permute.xlu0 %573
        %575 = vrot.lane.b32.xlu0 %v567, 46
        %v576 = vpop.permute.xlu0 %575
        %577 = vrot.lane.b32.xlu0 %v568, 46
        %v578 = vpop.permute.xlu0 %577
        %vm579 = vcmask 375808
        %v580 = vsel %vm579, %v570, %v572
        %v581 = vsel %vm579, %v572, %v574
        %v582 = vsel %vm579, %v574, %v576
        %v583 = vsel %vm579, %v576, %v578
        %v585 = vsel %vm254, %v555, 0
        %v588 = vsel %vm258, %v580, 0
        %v591 = vsel %vm258, %v581, 0
        %v594 = vsel %vm258, %v582, 0
        %v597 = vsel %vm258, %v583, 0
        %599 = vmatpush.bf16.msra.mxu0 0
        %600 = vmatpush.bf16.msra.mxu0 0
        %601 = vmatpush.bf16.msra.mxu0 0
        %602 = vmatpush.bf16.msra.mxu0 0
        %603 = vmatpush.bf16.msra.mxu0 0
        %604 = vmatpush.bf16.msra.mxu0 0
        %605 = vmatpush.bf16.msra.mxu0 0
        %606 = vmatpush.bf16.msra.mxu0 %v588
        %607 = vmatmul.bf16.gmra.mxu0 %v585
        %v608 = vpop.f32.mrf.mxu0
        %v609 = vadd.f32 0.0, %v608
        %v610 = vpop.f32.mrf.mxu0
        %611 = vdwg.mxu0
        %612 = vmatpush.bf16.msra.mxu0 0
        %613 = vmatpush.bf16.msra.mxu0 0
        %614 = vmatpush.bf16.msra.mxu0 0
        %615 = vmatpush.bf16.msra.mxu0 0
        %616 = vmatpush.bf16.msra.mxu0 0
        %617 = vmatpush.bf16.msra.mxu0 0
        %618 = vmatpush.bf16.msra.mxu0 0
        %619 = vmatpush.bf16.msra.mxu0 %v591
        %620 = vmatmul.bf16.gmra.mxu0 %v585
        %v621 = vpop.f32.mrf.mxu0
        %v622 = vadd.f32 0.0, %v621
        %v623 = vpop.f32.mrf.mxu0
        %624 = vdwg.mxu0
        %625 = vmatpush.bf16.msra.mxu0 0
        %626 = vmatpush.bf16.msra.mxu0 0
        %627 = vmatpush.bf16.msra.mxu0 0
        %628 = vmatpush.bf16.msra.mxu0 0
        %629 = vmatpush.bf16.msra.mxu0 0
        %630 = vmatpush.bf16.msra.mxu0 0
        %631 = vmatpush.bf16.msra.mxu0 0
        %632 = vmatpush.bf16.msra.mxu0 %v594
        %633 = vmatmul.bf16.gmra.mxu0 %v585
        %v634 = vpop.f32.mrf.mxu0
        %v635 = vadd.f32 0.0, %v634
        %v636 = vpop.f32.mrf.mxu0
        %637 = vdwg.mxu0
        %638 = vmatpush.bf16.msra.mxu0 0
        %639 = vmatpush.bf16.msra.mxu0 0
        %640 = vmatpush.bf16.msra.mxu0 0
        %641 = vmatpush.bf16.msra.mxu0 0
        %642 = vmatpush.bf16.msra.mxu0 0
        %643 = vmatpush.bf16.msra.mxu0 0
        %644 = vmatpush.bf16.msra.mxu0 0
        %645 = vmatpush.bf16.msra.mxu0 %v597
        %646 = vmatmul.bf16.gmra.mxu0 %v585
        %v647 = vpop.f32.mrf.mxu0
        %v648 = vadd.f32 0.0, %v647
        %v649 = vpop.f32.mrf.mxu0
        %650 = vdwg.mxu0
        %v651 = vld [vmem:[#allocation2] sm:$0xff]
        %v652 = vld [vmem:[#allocation2 + $0x8] sm:$0xff]
        %v653 = vld [vmem:[#allocation2 + $0x10] sm:$0xff]
        %v654 = vld [vmem:[#allocation2 + $0x18] sm:$0xff]
        %v655 = vadd.f32 %v651, %v609
        %v656 = vadd.f32 %v652, %v622
        %v657 = vadd.f32 %v653, %v635
        %v658 = vadd.f32 %v654, %v648
        %659 = vst [vmem:[#allocation2] sm:$0xff] %v655
        %660 = vst [vmem:[#allocation2 + $0x8] sm:$0xff] %v656
        %661 = vst [vmem:[#allocation2 + $0x10] sm:$0xff] %v657
        %662 = vst [vmem:[#allocation2 + $0x18] sm:$0xff] %v658
        %v663 = vld [vmem:[%s229 + $0x4] sm:$0xff]
        %v664 = vld [vmem:[%s229 + $0xc] sm:$0xff]
        %v665 = vld [vmem:[%s229 + $0x14] sm:$0xf]
        %s666 = scalar_lea.vmem %s1, 16
        %v667 = vld [vmem:[%s666] sm:$0xf]
        %v671 = vunpack.c.l.b16 %v663
        %v672 = vunpack.c.h.b16 %v663
        %v673 = vunpack.c.l.b16 %v664
        %v674 = vunpack.c.h.b16 %v664
        %v675 = vunpack.c.l.b16 %v665
        %v676 = vpack.c.b16 %v671, %v671
        %v677 = vpack.c.b16 %v672, %v672
        %v678 = vpack.c.b16 %v673, %v673
        %v679 = vpack.c.b16 %v674, %v674
        %v680 = vpack.c.b16 %v675, %v675
        %681 = vrot.lane.b32.xlu0 %v676, 39
        %v682 = vpop.permute.xlu0 %681
        %683 = vrot.lane.b32.xlu0 %v677, 39
        %v684 = vpop.permute.xlu0 %683
        %685 = vrot.lane.b32.xlu0 %v678, 39
        %v686 = vpop.permute.xlu0 %685
        %687 = vrot.lane.b32.xlu0 %v679, 39
        %v688 = vpop.permute.xlu0 %687
        %689 = vrot.lane.b32.xlu0 %v680, 39
        %v690 = vpop.permute.xlu0 %689
        %vm691 = vcmask 318464
        %v692 = vsel %vm691, %v682, %v684
        %v693 = vsel %vm691, %v684, %v686
        %v694 = vsel %vm691, %v686, %v688
        %v695 = vsel %vm691, %v688, %v690
        %v697 = vsel %vm254, %v667, 0
        %v700 = vsel %vm258, %v692, 0
        %v703 = vsel %vm258, %v693, 0
        %v706 = vsel %vm258, %v694, 0
        %v709 = vsel %vm258, %v695, 0
        %711 = vmatpush.bf16.msra.mxu0 0
        %712 = vmatpush.bf16.msra.mxu0 0
        %713 = vmatpush.bf16.msra.mxu0 0
        %714 = vmatpush.bf16.msra.mxu0 0
        %715 = vmatpush.bf16.msra.mxu0 0
        %716 = vmatpush.bf16.msra.mxu0 0
        %717 = vmatpush.bf16.msra.mxu0 0
        %718 = vmatpush.bf16.msra.mxu0 %v700
        %719 = vmatmul.bf16.gmra.mxu0 %v697
        %v720 = vpop.f32.mrf.mxu0
        %v721 = vadd.f32 0.0, %v720
        %v722 = vpop.f32.mrf.mxu0
        %723 = vdwg.mxu0
        %724 = vmatpush.bf16.msra.mxu0 0
        %725 = vmatpush.bf16.msra.mxu0 0
        %726 = vmatpush.bf16.msra.mxu0 0
        %727 = vmatpush.bf16.msra.mxu0 0
        %728 = vmatpush.bf16.msra.mxu0 0
        %729 = vmatpush.bf16.msra.mxu0 0
        %730 = vmatpush.bf16.msra.mxu0 0
        %731 = vmatpush.bf16.msra.mxu0 %v703
        %732 = vmatmul.bf16.gmra.mxu0 %v697
        %v733 = vpop.f32.mrf.mxu0
        %v734 = vadd.f32 0.0, %v733
        %v735 = vpop.f32.mrf.mxu0
        %736 = vdwg.mxu0
        %737 = vmatpush.bf16.msra.mxu0 0
        %738 = vmatpush.bf16.msra.mxu0 0
        %739 = vmatpush.bf16.msra.mxu0 0
        %740 = vmatpush.bf16.msra.mxu0 0
        %741 = vmatpush.bf16.msra.mxu0 0
        %742 = vmatpush.bf16.msra.mxu0 0
        %743 = vmatpush.bf16.msra.mxu0 0
        %744 = vmatpush.bf16.msra.mxu0 %v706
        %745 = vmatmul.bf16.gmra.mxu0 %v697
        %v746 = vpop.f32.mrf.mxu0
        %v747 = vadd.f32 0.0, %v746
        %v748 = vpop.f32.mrf.mxu0
        %749 = vdwg.mxu0
        %750 = vmatpush.bf16.msra.mxu0 0
        %751 = vmatpush.bf16.msra.mxu0 0
        %752 = vmatpush.bf16.msra.mxu0 0
        %753 = vmatpush.bf16.msra.mxu0 0
        %754 = vmatpush.bf16.msra.mxu0 0
        %755 = vmatpush.bf16.msra.mxu0 0
        %756 = vmatpush.bf16.msra.mxu0 0
        %757 = vmatpush.bf16.msra.mxu0 %v709
        %758 = vmatmul.bf16.gmra.mxu0 %v697
        %v759 = vpop.f32.mrf.mxu0
        %v760 = vadd.f32 0.0, %v759
        %v761 = vpop.f32.mrf.mxu0
        %762 = vdwg.mxu0
        %v763 = vld [vmem:[#allocation2] sm:$0xff]
        %v764 = vld [vmem:[#allocation2 + $0x8] sm:$0xff]
        %v765 = vld [vmem:[#allocation2 + $0x10] sm:$0xff]
        %v766 = vld [vmem:[#allocation2 + $0x18] sm:$0xff]
        %v767 = vadd.f32 %v763, %v721
        %v768 = vadd.f32 %v764, %v734
        %v769 = vadd.f32 %v765, %v747
        %v770 = vadd.f32 %v766, %v760
        %771 = vst [vmem:[#allocation2] sm:$0xff] %v767
        %772 = vst [vmem:[#allocation2 + $0x8] sm:$0xff] %v768
        %773 = vst [vmem:[#allocation2 + $0x10] sm:$0xff] %v769
        %774 = vst [vmem:[#allocation2 + $0x18] sm:$0xff] %v770
        %v775 = vld [vmem:[%s229 + $0x4] sm:$0xff]
        %v776 = vld [vmem:[%s229 + $0xc] sm:$0xff]
        %v777 = vld [vmem:[%s229 + $0x14] sm:$0xf]
        %s778 = scalar_lea.vmem %s1, 20
        %v779 = vld [vmem:[%s778] sm:$0xf]
        %v783 = vunpack.c.l.b16 %v775
        %v784 = vunpack.c.h.b16 %v775
        %v785 = vunpack.c.l.b16 %v776
        %v786 = vunpack.c.h.b16 %v776
        %v787 = vunpack.c.l.b16 %v777
        %v788 = vpack.c.b16 %v783, %v783
        %v789 = vpack.c.b16 %v784, %v784
        %v790 = vpack.c.b16 %v785, %v785
        %v791 = vpack.c.b16 %v786, %v786
        %v792 = vpack.c.b16 %v787, %v787
        %793 = vrot.lane.b32.xlu0 %v788, 32
        %v794 = vpop.permute.xlu0 %793
        %795 = vrot.lane.b32.xlu0 %v789, 32
        %v796 = vpop.permute.xlu0 %795
        %797 = vrot.lane.b32.xlu0 %v790, 32
        %v798 = vpop.permute.xlu0 %797
        %799 = vrot.lane.b32.xlu0 %v791, 32
        %v800 = vpop.permute.xlu0 %799
        %801 = vrot.lane.b32.xlu0 %v792, 32
        %v802 = vpop.permute.xlu0 %801
        %vm803 = vcmask 261120
        %v804 = vsel %vm803, %v794, %v796
        %v805 = vsel %vm803, %v796, %v798
        %v806 = vsel %vm803, %v798, %v800
        %v807 = vsel %vm803, %v800, %v802
        %v809 = vsel %vm254, %v779, 0
        %v812 = vsel %vm258, %v804, 0
        %v815 = vsel %vm258, %v805, 0
        %v818 = vsel %vm258, %v806, 0
        %v821 = vsel %vm258, %v807, 0
        %823 = vmatpush.bf16.msra.mxu0 0
        %824 = vmatpush.bf16.msra.mxu0 0
        %825 = vmatpush.bf16.msra.mxu0 0
        %826 = vmatpush.bf16.msra.mxu0 0
        %827 = vmatpush.bf16.msra.mxu0 0
        %828 = vmatpush.bf16.msra.mxu0 0
        %829 = vmatpush.bf16.msra.mxu0 0
        %830 = vmatpush.bf16.msra.mxu0 %v812
        %831 = vmatmul.bf16.gmra.mxu0 %v809
        %v832 = vpop.f32.mrf.mxu0
        %v833 = vadd.f32 0.0, %v832
        %v834 = vpop.f32.mrf.mxu0
        %835 = vdwg.mxu0
        %836 = vmatpush.bf16.msra.mxu0 0
        %837 = vmatpush.bf16.msra.mxu0 0
        %838 = vmatpush.bf16.msra.mxu0 0
        %839 = vmatpush.bf16.msra.mxu0 0
        %840 = vmatpush.bf16.msra.mxu0 0
        %841 = vmatpush.bf16.msra.mxu0 0
        %842 = vmatpush.bf16.msra.mxu0 0
        %843 = vmatpush.bf16.msra.mxu0 %v815
        %844 = vmatmul.bf16.gmra.mxu0 %v809
        %v845 = vpop.f32.mrf.mxu0
        %v846 = vadd.f32 0.0, %v845
        %v847 = vpop.f32.mrf.mxu0
        %848 = vdwg.mxu0
        %849 = vmatpush.bf16.msra.mxu0 0
        %850 = vmatpush.bf16.msra.mxu0 0
        %851 = vmatpush.bf16.msra.mxu0 0
        %852 = vmatpush.bf16.msra.mxu0 0
        %853 = vmatpush.bf16.msra.mxu0 0
        %854 = vmatpush.bf16.msra.mxu0 0
        %855 = vmatpush.bf16.msra.mxu0 0
        %856 = vmatpush.bf16.msra.mxu0 %v818
        %857 = vmatmul.bf16.gmra.mxu0 %v809
        %v858 = vpop.f32.mrf.mxu0
        %v859 = vadd.f32 0.0, %v858
        %v860 = vpop.f32.mrf.mxu0
        %861 = vdwg.mxu0
        %862 = vmatpush.bf16.msra.mxu0 0
        %863 = vmatpush.bf16.msra.mxu0 0
        %864 = vmatpush.bf16.msra.mxu0 0
        %865 = vmatpush.bf16.msra.mxu0 0
        %866 = vmatpush.bf16.msra.mxu0 0
        %867 = vmatpush.bf16.msra.mxu0 0
        %868 = vmatpush.bf16.msra.mxu0 0
        %869 = vmatpush.bf16.msra.mxu0 %v821
        %870 = vmatmul.bf16.gmra.mxu0 %v809
        %v871 = vpop.f32.mrf.mxu0
        %v872 = vadd.f32 0.0, %v871
        %v873 = vpop.f32.mrf.mxu0
        %874 = vdwg.mxu0
        %v875 = vld [vmem:[#allocation2] sm:$0xff]
        %v876 = vld [vmem:[#allocation2 + $0x8] sm:$0xff]
        %v877 = vld [vmem:[#allocation2 + $0x10] sm:$0xff]
        %v878 = vld [vmem:[#allocation2 + $0x18] sm:$0xff]
        %v879 = vadd.f32 %v875, %v833
        %v880 = vadd.f32 %v876, %v846
        %v881 = vadd.f32 %v877, %v859
        %v882 = vadd.f32 %v878, %v872
        %883 = vst [vmem:[#allocation2] sm:$0xff] %v879
        %884 = vst [vmem:[#allocation2 + $0x8] sm:$0xff] %v880
        %885 = vst [vmem:[#allocation2 + $0x10] sm:$0xff] %v881
        %886 = vst [vmem:[#allocation2 + $0x18] sm:$0xff] %v882
        %v887 = vld [vmem:[%s229 + $0xc] sm:$0xff]
        %v888 = vld [vmem:[%s229 + $0x14] sm:$0xff]
        %v889 = vld [vmem:[%s229 + $0x1c] sm:$0xf]
        %s890 = scalar_lea.vmem %s1, 24
        %v891 = vld [vmem:[%s890] sm:$0xf]
        %v895 = vunpack.c.l.b16 %v887
        %v896 = vunpack.c.h.b16 %v887
        %v897 = vunpack.c.l.b16 %v888
        %v898 = vunpack.c.h.b16 %v888
        %v899 = vunpack.c.l.b16 %v889
        %v900 = vpack.c.b16 %v895, %v895
        %v901 = vpack.c.b16 %v896, %v896
        %v902 = vpack.c.b16 %v897, %v897
        %v903 = vpack.c.b16 %v898, %v898
        %v904 = vpack.c.b16 %v899, %v899
        %905 = vrot.lane.b32.xlu0 %v900, 92
        %v906 = vpop.permute.xlu0 %905
        %907 = vrot.lane.b32.xlu0 %v901, 92
        %v908 = vpop.permute.xlu0 %907
        %909 = vrot.lane.b32.xlu0 %v902, 92
        %v910 = vpop.permute.xlu0 %909
        %911 = vrot.lane.b32.xlu0 %v903, 92
        %v912 = vpop.permute.xlu0 %911
        %913 = vrot.lane.b32.xlu0 %v904, 92
        %v914 = vpop.permute.xlu0 %913
        %vm915 = vcmask 752640
        %v916 = vsel %vm915, %v906, %v908
        %v917 = vsel %vm915, %v908, %v910
        %v918 = vsel %vm915, %v910, %v912
        %v919 = vsel %vm915, %v912, %v914
        %v921 = vsel %vm254, %v891, 0
        %v924 = vsel %vm258, %v916, 0
        %v927 = vsel %vm258, %v917, 0
        %v930 = vsel %vm258, %v918, 0
        %v933 = vsel %vm258, %v919, 0
        %935 = vmatpush.bf16.msra.mxu0 0
        %936 = vmatpush.bf16.msra.mxu0 0
        %937 = vmatpush.bf16.msra.mxu0 0
        %938 = vmatpush.bf16.msra.mxu0 0
        %939 = vmatpush.bf16.msra.mxu0 0
        %940 = vmatpush.bf16.msra.mxu0 0
        %941 = vmatpush.bf16.msra.mxu0 0
        %942 = vmatpush.bf16.msra.mxu0 %v924
        %943 = vmatmul.bf16.gmra.mxu0 %v921
        %v944 = vpop.f32.mrf.mxu0
        %v945 = vadd.f32 0.0, %v944
        %v946 = vpop.f32.mrf.mxu0
        %947 = vdwg.mxu0
        %948 = vmatpush.bf16.msra.mxu0 0
        %949 = vmatpush.bf16.msra.mxu0 0
        %950 = vmatpush.bf16.msra.mxu0 0
        %951 = vmatpush.bf16.msra.mxu0 0
        %952 = vmatpush.bf16.msra.mxu0 0
        %953 = vmatpush.bf16.msra.mxu0 0
        %954 = vmatpush.bf16.msra.mxu0 0
        %955 = vmatpush.bf16.msra.mxu0 %v927
        %956 = vmatmul.bf16.gmra.mxu0 %v921
        %v957 = vpop.f32.mrf.mxu0
        %v958 = vadd.f32 0.0, %v957
        %v959 = vpop.f32.mrf.mxu0
        %960 = vdwg.mxu0
        %961 = vmatpush.bf16.msra.mxu0 0
        %962 = vmatpush.bf16.msra.mxu0 0
        %963 = vmatpush.bf16.msra.mxu0 0
        %964 = vmatpush.bf16.msra.mxu0 0
        %965 = vmatpush.bf16.msra.mxu0 0
        %966 = vmatpush.bf16.msra.mxu0 0
        %967 = vmatpush.bf16.msra.mxu0 0
        %968 = vmatpush.bf16.msra.mxu0 %v930
        %969 = vmatmul.bf16.gmra.mxu0 %v921
        %v970 = vpop.f32.mrf.mxu0
        %v971 = vadd.f32 0.0, %v970
        %v972 = vpop.f32.mrf.mxu0
        %973 = vdwg.mxu0
        %974 = vmatpush.bf16.msra.mxu0 0
        %975 = vmatpush.bf16.msra.mxu0 0
        %976 = vmatpush.bf16.msra.mxu0 0
        %977 = vmatpush.bf16.msra.mxu0 0
        %978 = vmatpush.bf16.msra.mxu0 0
        %979 = vmatpush.bf16.msra.mxu0 0
        %980 = vmatpush.bf16.msra.mxu0 0
        %981 = vmatpush.bf16.msra.mxu0 %v933
        %982 = vmatmul.bf16.gmra.mxu0 %v921
        %v983 = vpop.f32.mrf.mxu0
        %v984 = vadd.f32 0.0, %v983
        %v985 = vpop.f32.mrf.mxu0
        %986 = vdwg.mxu0
        %v987 = vld [vmem:[#allocation2] sm:$0xff]
        %v988 = vld [vmem:[#allocation2 + $0x8] sm:$0xff]
        %v989 = vld [vmem:[#allocation2 + $0x10] sm:$0xff]
        %v990 = vld [vmem:[#allocation2 + $0x18] sm:$0xff]
        %v991 = vadd.f32 %v987, %v945
        %v992 = vadd.f32 %v988, %v958
        %v993 = vadd.f32 %v989, %v971
        %v994 = vadd.f32 %v990, %v984
        %995 = vst [vmem:[#allocation2] sm:$0xff] %v991
        %996 = vst [vmem:[#allocation2 + $0x8] sm:$0xff] %v992
        %997 = vst [vmem:[#allocation2 + $0x10] sm:$0xff] %v993
        %998 = vst [vmem:[#allocation2 + $0x18] sm:$0xff] %v994
        %v999 = vld [vmem:[%s229 + $0xc] sm:$0xff]
        %v1000 = vld [vmem:[%s229 + $0x14] sm:$0xff]
        %v1001 = vld [vmem:[%s229 + $0x1c] sm:$0xf]
        %s1002 = scalar_lea.vmem %s1, 28
        %v1003 = vld [vmem:[%s1002] sm:$0xf]
        %v1007 = vunpack.c.l.b16 %v999
        %v1008 = vunpack.c.h.b16 %v999
        %v1009 = vunpack.c.l.b16 %v1000
        %v1010 = vunpack.c.h.b16 %v1000
        %v1011 = vunpack.c.l.b16 %v1001
        %v1012 = vpack.c.b16 %v1007, %v1007
        %v1013 = vpack.c.b16 %v1008, %v1008
        %v1014 = vpack.c.b16 %v1009, %v1009
        %v1015 = vpack.c.b16 %v1010, %v1010
        %v1016 = vpack.c.b16 %v1011, %v1011
        %1017 = vrot.lane.b32.xlu0 %v1012, 85
        %v1018 = vpop.permute.xlu0 %1017
        %1019 = vrot.lane.b32.xlu0 %v1013, 85
        %v1020 = vpop.permute.xlu0 %1019
        %1021 = vrot.lane.b32.xlu0 %v1014, 85
        %v1022 = vpop.permute.xlu0 %1021
        %1023 = vrot.lane.b32.xlu0 %v1015, 85
        %v1024 = vpop.permute.xlu0 %1023
        %1025 = vrot.lane.b32.xlu0 %v1016, 85
        %v1026 = vpop.permute.xlu0 %1025
        %vm1027 = vcmask 695296
        %v1028 = vsel %vm1027, %v1018, %v1020
        %v1029 = vsel %vm1027, %v1020, %v1022
        %v1030 = vsel %vm1027, %v1022, %v1024
        %v1031 = vsel %vm1027, %v1024, %v1026
        %v1033 = vsel %vm254, %v1003, 0
        %v1036 = vsel %vm258, %v1028, 0
        %v1039 = vsel %vm258, %v1029, 0
        %v1042 = vsel %vm258, %v1030, 0
        %v1045 = vsel %vm258, %v1031, 0
        %1047 = vmatpush.bf16.msra.mxu0 0
        %1048 = vmatpush.bf16.msra.mxu0 0
        %1049 = vmatpush.bf16.msra.mxu0 0
        %1050 = vmatpush.bf16.msra.mxu0 0
        %1051 = vmatpush.bf16.msra.mxu0 0
        %1052 = vmatpush.bf16.msra.mxu0 0
        %1053 = vmatpush.bf16.msra.mxu0 0
        %1054 = vmatpush.bf16.msra.mxu0 %v1036
        %1055 = vmatmul.bf16.gmra.mxu0 %v1033
        %v1056 = vpop.f32.mrf.mxu0
        %v1057 = vadd.f32 0.0, %v1056
        %v1058 = vpop.f32.mrf.mxu0
        %1059 = vdwg.mxu0
        %1060 = vmatpush.bf16.msra.mxu0 0
        %1061 = vmatpush.bf16.msra.mxu0 0
        %1062 = vmatpush.bf16.msra.mxu0 0
        %1063 = vmatpush.bf16.msra.mxu0 0
        %1064 = vmatpush.bf16.msra.mxu0 0
        %1065 = vmatpush.bf16.msra.mxu0 0
        %1066 = vmatpush.bf16.msra.mxu0 0
        %1067 = vmatpush.bf16.msra.mxu0 %v1039
        %1068 = vmatmul.bf16.gmra.mxu0 %v1033
        %v1069 = vpop.f32.mrf.mxu0
        %v1070 = vadd.f32 0.0, %v1069
        %v1071 = vpop.f32.mrf.mxu0
        %1072 = vdwg.mxu0
        %1073 = vmatpush.bf16.msra.mxu0 0
        %1074 = vmatpush.bf16.msra.mxu0 0
        %1075 = vmatpush.bf16.msra.mxu0 0
        %1076 = vmatpush.bf16.msra.mxu0 0
        %1077 = vmatpush.bf16.msra.mxu0 0
        %1078 = vmatpush.bf16.msra.mxu0 0
        %1079 = vmatpush.bf16.msra.mxu0 0
        %1080 = vmatpush.bf16.msra.mxu0 %v1042
        %1081 = vmatmul.bf16.gmra.mxu0 %v1033
        %v1082 = vpop.f32.mrf.mxu0
        %v1083 = vadd.f32 0.0, %v1082
        %v1084 = vpop.f32.mrf.mxu0
        %1085 = vdwg.mxu0
        %1086 = vmatpush.bf16.msra.mxu0 0
        %1087 = vmatpush.bf16.msra.mxu0 0
        %1088 = vmatpush.bf16.msra.mxu0 0
        %1089 = vmatpush.bf16.msra.mxu0 0
        %1090 = vmatpush.bf16.msra.mxu0 0
        %1091 = vmatpush.bf16.msra.mxu0 0
        %1092 = vmatpush.bf16.msra.mxu0 0
        %1093 = vmatpush.bf16.msra.mxu0 %v1045
        %1094 = vmatmul.bf16.gmra.mxu0 %v1033
        %v1095 = vpop.f32.mrf.mxu0
        %v1096 = vadd.f32 0.0, %v1095
        %v1097 = vpop.f32.mrf.mxu0
        %1098 = vdwg.mxu0
        %v1099 = vld [vmem:[#allocation2] sm:$0xff]
        %v1100 = vld [vmem:[#allocation2 + $0x8] sm:$0xff]
        %v1101 = vld [vmem:[#allocation2 + $0x10] sm:$0xff]
        %v1102 = vld [vmem:[#allocation2 + $0x18] sm:$0xff]
        %v1103 = vadd.f32 %v1099, %v1057
        %v1104 = vadd.f32 %v1100, %v1070
        %v1105 = vadd.f32 %v1101, %v1083
        %v1106 = vadd.f32 %v1102, %v1096
        %1107 = vst [vmem:[#allocation2] sm:$0xff] %v1103
        %1108 = vst [vmem:[#allocation2 + $0x8] sm:$0xff] %v1104
        %1109 = vst [vmem:[#allocation2 + $0x10] sm:$0xff] %v1105
        %1110 = vst [vmem:[#allocation2 + $0x18] sm:$0xff] %v1106
        %v1111 = vld [vmem:[%s229 + $0xc] sm:$0xff]
        %v1112 = vld [vmem:[%s229 + $0x14] sm:$0xff]
        %v1113 = vld [vmem:[%s229 + $0x1c] sm:$0xf]
        %s1114 = scalar_lea.vmem %s1, 32
        %v1115 = vld [vmem:[%s1114] sm:$0xf]
        %v1119 = vunpack.c.l.b16 %v1111
        %v1120 = vunpack.c.h.b16 %v1111
        %v1121 = vunpack.c.l.b16 %v1112
        %v1122 = vunpack.c.h.b16 %v1112
        %v1123 = vunpack.c.l.b16 %v1113
        %v1124 = vpack.c.b16 %v1119, %v1119
        %v1125 = vpack.c.b16 %v1120, %v1120
        %v1126 = vpack.c.b16 %v1121, %v1121
        %v1127 = vpack.c.b16 %v1122, %v1122
        %v1128 = vpack.c.b16 %v1123, %v1123
        %1129 = vrot.lane.b32.xlu0 %v1124, 78
        %v1130 = vpop.permute.xlu0 %1129
        %1131 = vrot.lane.b32.xlu0 %v1125, 78
        %v1132 = vpop.permute.xlu0 %1131
        %1133 = vrot.lane.b32.xlu0 %v1126, 78
        %v1134 = vpop.permute.xlu0 %1133
        %1135 = vrot.lane.b32.xlu0 %v1127, 78
        %v1136 = vpop.permute.xlu0 %1135
        %1137 = vrot.lane.b32.xlu0 %v1128, 78
        %v1138 = vpop.permute.xlu0 %1137
        %vm1139 = vcmask 637952
        %v1140 = vsel %vm1139, %v1130, %v1132
        %v1141 = vsel %vm1139, %v1132, %v1134
        %v1142 = vsel %vm1139, %v1134, %v1136
        %v1143 = vsel %vm1139, %v1136, %v1138
        %v1145 = vsel %vm254, %v1115, 0
        %v1148 = vsel %vm258, %v1140, 0
        %v1151 = vsel %vm258, %v1141, 0
        %v1154 = vsel %vm258, %v1142, 0
        %v1157 = vsel %vm258, %v1143, 0
        %1159 = vmatpush.bf16.msra.mxu0 0
        %1160 = vmatpush.bf16.msra.mxu0 0
        %1161 = vmatpush.bf16.msra.mxu0 0
        %1162 = vmatpush.bf16.msra.mxu0 0
        %1163 = vmatpush.bf16.msra.mxu0 0
        %1164 = vmatpush.bf16.msra.mxu0 0
        %1165 = vmatpush.bf16.msra.mxu0 0
        %1166 = vmatpush.bf16.msra.mxu0 %v1148
        %1167 = vmatmul.bf16.gmra.mxu0 %v1145
        %v1168 = vpop.f32.mrf.mxu0
        %v1169 = vadd.f32 0.0, %v1168
        %v1170 = vpop.f32.mrf.mxu0
        %1171 = vdwg.mxu0
        %1172 = vmatpush.bf16.msra.mxu0 0
        %1173 = vmatpush.bf16.msra.mxu0 0
        %1174 = vmatpush.bf16.msra.mxu0 0
        %1175 = vmatpush.bf16.msra.mxu0 0
        %1176 = vmatpush.bf16.msra.mxu0 0
        %1177 = vmatpush.bf16.msra.mxu0 0
        %1178 = vmatpush.bf16.msra.mxu0 0
        %1179 = vmatpush.bf16.msra.mxu0 %v1151
        %1180 = vmatmul.bf16.gmra.mxu0 %v1145
        %v1181 = vpop.f32.mrf.mxu0
        %v1182 = vadd.f32 0.0, %v1181
        %v1183 = vpop.f32.mrf.mxu0
        %1184 = vdwg.mxu0
        %1185 = vmatpush.bf16.msra.mxu0 0
        %1186 = vmatpush.bf16.msra.mxu0 0
        %1187 = vmatpush.bf16.msra.mxu0 0
        %1188 = vmatpush.bf16.msra.mxu0 0
        %1189 = vmatpush.bf16.msra.mxu0 0
        %1190 = vmatpush.bf16.msra.mxu0 0
        %1191 = vmatpush.bf16.msra.mxu0 0
        %1192 = vmatpush.bf16.msra.mxu0 %v1154
        %1193 = vmatmul.bf16.gmra.mxu0 %v1145
        %v1194 = vpop.f32.mrf.mxu0
        %v1195 = vadd.f32 0.0, %v1194
        %v1196 = vpop.f32.mrf.mxu0
        %1197 = vdwg.mxu0
        %1198 = vmatpush.bf16.msra.mxu0 0
        %1199 = vmatpush.bf16.msra.mxu0 0
        %1200 = vmatpush.bf16.msra.mxu0 0
        %1201 = vmatpush.bf16.msra.mxu0 0
        %1202 = vmatpush.bf16.msra.mxu0 0
        %1203 = vmatpush.bf16.msra.mxu0 0
        %1204 = vmatpush.bf16.msra.mxu0 0
        %1205 = vmatpush.bf16.msra.mxu0 %v1157
        %1206 = vmatmul.bf16.gmra.mxu0 %v1145
        %v1207 = vpop.f32.mrf.mxu0
        %v1208 = vadd.f32 0.0, %v1207
        %v1209 = vpop.f32.mrf.mxu0
        %1210 = vdwg.mxu0
        %v1211 = vld [vmem:[#allocation2] sm:$0xff]
        %v1212 = vld [vmem:[#allocation2 + $0x8] sm:$0xff]
        %v1213 = vld [vmem:[#allocation2 + $0x10] sm:$0xff]
        %v1214 = vld [vmem:[#allocation2 + $0x18] sm:$0xff]
        %v1215 = vadd.f32 %v1211, %v1169
        %v1216 = vadd.f32 %v1212, %v1182
        %v1217 = vadd.f32 %v1213, %v1195
        %v1218 = vadd.f32 %v1214, %v1208
        %1219 = vst [vmem:[#allocation2] sm:$0xff] %v1215
        %1220 = vst [vmem:[#allocation2 + $0x8] sm:$0xff] %v1216
        %1221 = vst [vmem:[#allocation2 + $0x10] sm:$0xff] %v1217
        %1222 = vst [vmem:[#allocation2 + $0x18] sm:$0xff] %v1218
        %v1223 = vld [vmem:[#allocation2] sm:$0xff]
        %v1224 = vld [vmem:[#allocation2 + $0x8] sm:$0xff]
        %v1225 = vld [vmem:[#allocation2 + $0x10] sm:$0xff]
        %v1226 = vld [vmem:[#allocation2 + $0x18] sm:$0xff]
        %v1227 = vld [vmem:[%s3] sm:$0xf]
        %v1229 = vperm.slane %v1227, 0
        %v1230 = vperm.slane %v1227, 1
        %v1231 = vperm.slane %v1227, 2
        %v1232 = vperm.slane %v1227, 3
        %v1237 = vmul.f32 %v1223, %v1229
        %v1238 = vmul.f32 %v1224, %v1230
        %v1239 = vmul.f32 %v1225, %v1231
        %v1240 = vmul.f32 %v1226, %v1232
        %v1241 = vpack.c.bf16 %v1238, %v1237
        %v1242 = vpack.c.bf16 %v1240, %v1239
        %1243 = vst [vmem:[%s218] sm:$0xff] %v1241
        %1244 = vst [vmem:[%s218 + $0x8] sm:$0xff] %v1242
        %v1245 = vadd.f32 %v1237, %v1238
        %v1246 = vadd.f32 %v1245, %v1239
        %v1247 = vadd.f32 %v1246, %v1240
        %1248 = vadd.xlane.f32.xlu0 %v1247
        %v1249 = vpop.xlane.xlu0 %1248
        %vm1250 = vcmask 7168
        %1251 = vst.msk [vmem:[%s233] sm:$0xff] %vm1250, %v1249
        %v1252 = vmul.f32 %v1237, %v1237
        %v1253 = vmul.f32 %v1238, %v1238
        %v1254 = vmul.f32 %v1239, %v1239
        %v1255 = vmul.f32 %v1240, %v1240
        %v1256 = vadd.f32 %v1252, %v1253
        %v1257 = vadd.f32 %v1256, %v1254
        %v1258 = vadd.f32 %v1257, %v1255
        %1259 = vadd.xlane.f32.xlu0 %v1258
        %v1260 = vpop.xlane.xlu0 %1259
        %vm1261 = vcmask 15368
        %1262 = vst.msk [vmem:[%s233] sm:$0xff] %vm1261, %v1260
        %s1263 = sand.u32 %s117, 1
        %s1264 = scalar_lea.sflag [#allocation4], %s1263
        %s1265 = sand.u32 %s117, 1
        %s1266 = smul.addr %s1265, 16
        %s1267 = scalar_lea.vmem [#allocation3], %s1266
        %p1268 = scmp.lt.s32.totalorder %s20, 1
        %s1269 = scalar_select %p1268, %s20, 1
        %s1270 = smul.addr %s1269, 8
        %s1271 = scalar_lea.vmem %s5, %s1270
        // Predicated region
        $region37: #{tpu_custom_call.1} parent=35 // pred_check
          %p1272 = pneg %p127
        $region38: #{tpu_custom_call.1} parent=35 // pred_check_branch
          %1274 = sbr.rel (%p1272) target = $region40
        $region39: #{tpu_custom_call.1} parent=35 // pred_region
          %1276 = vsyncadd %s1264, 0
          %s1277 = smul.addr %s20, 4
          %s1278 = smul.addr %s1277, 4
          %s1279 = scalar_lea.hbm %s4, %s1278
          %s1281 = sshll.u32 %s1267, 4
          %s1282 = int_to_ptr.vmem [resolvable:$true] %s1281
          %s1283 = sshll.u32 %s1279, 4
          %s1284 = int_to_ptr.hbm [resolvable:$true] %s1283
          %1286 = dma.vmem_to_hbm [thread:$0]  %s1282, 256, %s1284, %s1264
        $region40: #{tpu_custom_call.1} parent=35 // pred_fallthru
          _
        // Predicated region
        $region41: #{tpu_custom_call.1} parent=35 // pred_check
          %p1287 = pneg %p153
        $region42: #{tpu_custom_call.1} parent=35 // pred_check_branch
          %1289 = sbr.rel (%p1287) target = $region44
        $region43: #{tpu_custom_call.1} parent=35 // pred_region
          _
        $region44: #{tpu_custom_call.1} parent=35 // pred_fallthru
          _
      $region36: #{tpu_custom_call.1} parent=5 // pred_fallthru
        _
      %p1290 = scmp.le.s32.totalorder 2, %s15
      // Predicated region
      $region45: #{tpu_custom_call.1} parent=5 // pred_check
        %p1291 = pneg %p1290
      $region46: #{tpu_custom_call.1} parent=5 // pred_check_branch
        %1293 = sbr.rel (%p1291) target = $region48
      $region47: #{tpu_custom_call.1} parent=5 // pred_region
        %s1294 = ssub.s32 %s15, 2
        // Predicated region
        $region49: #{tpu_custom_call.1} parent=47 // pred_check
          %p1295 = pneg %p133
        $region50: #{tpu_custom_call.1} parent=47 // pred_check_branch
          %1297 = sbr.rel (%p1295) target = $region52
        $region51: #{tpu_custom_call.1} parent=47 // pred_region
          %s1298 = sand.u32 %s118, 1
          %s1299 = scalar_lea.sflag [#allocation4], %s1298
          %s1300 = sand.u32 %s118, 1
          %s1301 = smul.addr %s1300, 16
          %s1302 = scalar_lea.vmem [#allocation3], %s1301
          %1304 = dma.done %s1299, 256
        $region52: #{tpu_custom_call.1} parent=47 // pred_fallthru
          _
        // Predicated region
        $region53: #{tpu_custom_call.1} parent=47 // pred_check
          %p1305 = pneg %p159
        $region54: #{tpu_custom_call.1} parent=47 // pred_check_branch
          %1307 = sbr.rel (%p1305) target = $region56
        $region55: #{tpu_custom_call.1} parent=47 // pred_region
          %p1308 = scmp.lt.s32.totalorder %s21, 1
          %s1309 = scalar_select %p1308, %s21, 1
          %s1310 = smul.addr %s1309, 8
          %s1311 = scalar_lea.vmem %s5, %s1310
        $region56: #{tpu_custom_call.1} parent=47 // pred_fallthru
          _
      $region48: #{tpu_custom_call.1} parent=5 // pred_fallthru
        _
    $region6: #{tpu_custom_call.1} parent=1 // loop_footer
      %s19 = sadd.s32 1, %s15
    $region7: #{tpu_custom_call.1} parent=1 // loop_footer_branch
      %14 = sbr.rel target = $region3
    $region8: #{tpu_custom_call.1} parent=1 // loop_exit
      _
    %1312 = vsyncpa [#allocation4], 1
    %s1313 = scalar_lea.sflag [#allocation4], 1
    %1314 = vsyncpa %s1313, 1

</llo_original>
